<compile_context>
chip_gen: v6e
topology: v6e:2x2x1
jax: 0.10.0
libtpu: 0.0.40
codegen_flags: <defaults>
</compile_context>

<pallas_src>
import functools

import jax
import jax.numpy as jnp
from jax.experimental import pallas as pl
from jax.experimental.pallas import tpu as pltpu

EPS = 1e-5  # nn.BatchNorm2d default eps


# ------------------------------ fused kernel -------------------------------

def _cnn2_kernel(xcol_ref, w1_ref, s1_ref, b1_ref, w2_ref, s2_ref, b2_ref,
                 lw_ref, lb_ref, o_ref, a1_ref, pad_ref, a3_ref,
                 *, B, H, W, C1, C2):
    HW = H * W
    Hh, Wh = H // 2, W // 2
    HW2 = Hh * Wh

    # ------------- block 1: conv3x3 as ONE fat matmul (+BN folded) ----------
    # xcol_ref[0]: (B*HW, 9*C_in) bf16 im2col slab (host packed, lane dense).
    y1 = jnp.dot(xcol_ref[0], w1_ref[...],
                 preferred_element_type=jnp.float32)            # (B*HW, C1)
    y1 = jnp.maximum(y1 * s1_ref[...] + b1_ref[...], 0.0)       # f32 epilogue
    a1_ref[...] = y1.reshape(B * H, W, C1)

    # --------------- fused maxpool 2x2 (stays in VMEM) ----------------------
    t1 = jnp.maximum(a1_ref[:, pl.ds(0, Wh, 2), :],             # even W cols
                     a1_ref[:, pl.ds(1, Wh, 2), :])             # odd  W cols
    t1 = t1.reshape(B * Hh, 2, Wh, C1)                          # split H pairs
    p1 = jnp.maximum(t1[:, 0], t1[:, 1])                        # (B*Hh, Wh, C1)

    # zero-padded (SAME) pooled activations for conv2 taps (bf16 MXU inputs).
    # Re-zeroed every step: scratch is per-core and program_id==0 gating is
    # unsafe under megacore grid partitioning.
    pad_ref[...] = jnp.zeros((B, Hh + 2, Wh + 2, C1), pad_ref.dtype)
    pad_ref[:, 1:Hh + 1, 1:Wh + 1, :] = (
        p1.reshape(B, Hh, Wh, C1).astype(pad_ref.dtype))

    # ---------------- block 2: conv3x3 (+BN folded) + ReLU ------------------
    # 9 shifted-tap matmuls accumulated in f32, M = B*HW2.
    acc2 = jnp.zeros((B * HW2, C2), jnp.float32)
    for k in range(9):
        ky, kx = divmod(k, 3)
        tap = pad_ref[:, ky:ky + Hh, kx:kx + Wh, :].reshape(B * HW2, C1)
        acc2 = acc2 + jnp.dot(tap, w2_ref[k],
                              preferred_element_type=jnp.float32)
    y2 = jnp.maximum(acc2 * s2_ref[...] + b2_ref[...], 0.0)
    a3_ref[...] = y2.reshape(B * Hh, Wh, C2)

    # --------------- fused maxpool 2x2 --------------------------------------
    Hq, Wq = Hh // 2, Wh // 2
    t2 = jnp.maximum(a3_ref[:, pl.ds(0, Wq, 2), :],
                     a3_ref[:, pl.ds(1, Wq, 2), :])
    t2 = t2.reshape(B * Hq, 2, Wq, C2)
    p2 = jnp.maximum(t2[:, 0], t2[:, 1])                        # (B*Hq, Wq, C2)

    # ------------- global average pool + Linear head (epilogue) -------------
    p2b = p2.reshape(B, Hq, Wq, C2)
    gap = jnp.sum(jnp.sum(p2b, axis=1), axis=1)                 # (B, C2)
    gap = gap * (1.0 / float(Hq * Wq))
    out = jnp.dot(gap, lw_ref[...], preferred_element_type=jnp.float32)
    out = out + lb_ref[...]                                     # (B, classes_pad)
    o_ref[0] = out.astype(o_ref.dtype)


# ------------------------------ host wrapper --------------------------------

def _fold_bn(conv_b, gamma, beta, mean, var):
    scale = gamma / jnp.sqrt(var + EPS)
    bias = (conv_b - mean) * scale + beta
    return scale[None, :].astype(jnp.float32), bias[None, :].astype(jnp.float32)


def _pick_batch_tile(n):
    # >=2 grid steps when possible (keeps both v7x TensorCores busy), several
    # images per step for MXU row utilization, capped to bound VMEM pressure.
    if n <= 1:
        return 1
    return max(1, min(8, -(-n // 2)))


def cnn2_forward(x_nchw, params):
    # BatchNorm applied in inference mode (running statistics), folded into a
    # per-channel scale/bias inside the fused kernel.
    x = jnp.transpose(x_nchw, (0, 2, 3, 1)).astype(jnp.float32)   # NCHW -> NHWC
    N, H, W, C_in = x.shape
    assert H % 4 == 0 and W % 4 == 0, "spatial dims must be divisible by 4"
    HW = H * W
    Hh, Wh = H // 2, W // 2

    # ----- fold BN into conv, pack weights for the MXU -----
    cw1, cb1, g1, bt1, m1, v1 = params["block1"]
    cw2, cb2, g2, bt2, m2, v2 = params["block2"]
    C1, C2 = cw1.shape[0], cw2.shape[0]
    # conv1 weight as a (9*C_in, C1) fat matrix; K index = (ky*3+kx)*C_in + cin
    w1 = jnp.transpose(cw1, (2, 3, 1, 0)).reshape(9 * C_in, C1).astype(jnp.bfloat16)
    # conv2 weight as (9, C1, C2) per-tap matrices, k = ky*3 + kx
    w2 = jnp.transpose(cw2, (2, 3, 1, 0)).reshape(9, C1, C2).astype(jnp.bfloat16)
    s1, b1 = _fold_bn(cb1, g1, bt1, m1, v1)
    s2, b2 = _fold_bn(cb2, g2, bt2, m2, v2)

    # ----- linear head, padded to a lane-dense (128-wide) output -----
    classes = params["linear_w"].shape[0]
    cp = ((classes + 127) // 128) * 128
    lw = jnp.zeros((C2, cp), jnp.float32).at[:, :classes].set(
        jnp.transpose(params["linear_w"]).astype(jnp.float32))
    lb = jnp.zeros((1, cp), jnp.float32).at[0, :classes].set(
        params["linear_b"].astype(jnp.float32))

    # ----- host-side im2col for conv1 (lane-dense bf16 slab) -----
    xp = jnp.pad(x, ((0, 0), (1, 1), (1, 1), (0, 0)))             # SAME pad
    taps = [xp[:, ky:ky + H, kx:kx + W, :]
            for ky in range(3) for kx in range(3)]
    x_col = jnp.concatenate(taps, axis=-1)                        # (N,H,W,9*Cin)
    x_col = x_col.reshape(N, HW, 9 * C_in).astype(jnp.bfloat16)

    # ----- batch tiling: bt images per grid step -----
    bt = _pick_batch_tile(N)
    G = -(-N // bt)
    N_pad = G * bt
    if N_pad != N:
        x_col = jnp.pad(x_col, ((0, N_pad - N), (0, 0), (0, 0)))
    x_col = x_col.reshape(G, bt * HW, 9 * C_in)

    kernel = functools.partial(_cnn2_kernel, B=bt, H=H, W=W, C1=C1, C2=C2)

    flops = 2 * N_pad * (HW * 9 * C_in * C1 + Hh * Wh * 9 * C1 * C2 + C2 * cp)
    bytes_accessed = int(x_col.size * 2 + w1.size * 2 + w2.size * 2
                         + (s1.size + b1.size + s2.size + b2.size) * 4
                         + lw.size * 4 + lb.size * 4 + N_pad * cp * 4)
    cost = pl.CostEstimate(flops=flops, transcendentals=0,
                           bytes_accessed=bytes_accessed)

    out = pl.pallas_call(
        kernel,
        out_shape=jax.ShapeDtypeStruct((G, bt, cp), jnp.float32),
        grid=(G,),
        in_specs=[
            pl.BlockSpec((1, bt * HW, 9 * C_in), lambda n: (n, 0, 0)),
            pl.BlockSpec((9 * C_in, C1), lambda n: (0, 0)),
            pl.BlockSpec((1, C1), lambda n: (0, 0)),
            pl.BlockSpec((1, C1), lambda n: (0, 0)),
            pl.BlockSpec((9, C1, C2), lambda n: (0, 0, 0)),
            pl.BlockSpec((1, C2), lambda n: (0, 0)),
            pl.BlockSpec((1, C2), lambda n: (0, 0)),
            pl.BlockSpec((C2, cp), lambda n: (0, 0)),
            pl.BlockSpec((1, cp), lambda n: (0, 0)),
        ],
        out_specs=pl.BlockSpec((1, bt, cp), lambda n: (n, 0, 0)),
        scratch_shapes=[
            pltpu.VMEM((bt * H, W, C1), jnp.float32),              # conv1 output
            pltpu.VMEM((bt, Hh + 2, Wh + 2, C1), jnp.bfloat16),    # padded pool1
            pltpu.VMEM((bt * Hh, Wh, C2), jnp.float32),            # conv2 output
        ],
        compiler_params=pltpu.CompilerParams(
            dimension_semantics=("parallel",)),
        cost_estimate=cost,
    )(x_col, w1, s1, b1, w2, s2, b2, lw, lb)

    return out.reshape(N_pad, cp)[:N, :classes]


# --------------------------- pure-JAX reference -----------------------------

def cnn2_reference(x_nchw, params):
    x = jnp.transpose(x_nchw, (0, 2, 3, 1)).astype(jnp.float32)

    def block(x, prm):
        conv_w, conv_b, gamma, beta, mean, var = prm
        w_hwio = jnp.transpose(conv_w, (2, 3, 1, 0))
        y = jax.lax.conv_general_dilated(
            x, w_hwio, (1, 1), "SAME",
            dimension_numbers=("NHWC", "HWIO", "NHWC"),
            precision=jax.lax.Precision.HIGHEST) + conv_b
        y = (y - mean) / jnp.sqrt(var + EPS) * gamma + beta
        y = jnp.maximum(y, 0.0)
        a = y[:, 0::2, 0::2, :]
        b = y[:, 0::2, 1::2, :]
        c = y[:, 1::2, 0::2, :]
        d = y[:, 1::2, 1::2, :]
        return jnp.maximum(jnp.maximum(a, b), jnp.maximum(c, d))

    y = block(block(x, params["block1"]), params["block2"])
    pooled = jnp.mean(y, axis=(1, 2))
    return pooled @ params["linear_w"].T + params["linear_b"]


# ---------------------------------- main ------------------------------------

def init_params(key, channels, classes):
    def conv_bn(k, cin, cout):
        kw, kb, kg, kbt, km, kv = jax.random.split(k, 6)
        return (0.1 * jax.random.normal(kw, (cout, cin, 3, 3), jnp.float32),
                0.1 * jax.random.normal(kb, (cout,), jnp.float32),
                1.0 + 0.1 * jax.random.normal(kg, (cout,), jnp.float32),   # gamma
                0.1 * jax.random.normal(kbt, (cout,), jnp.float32),        # beta
                0.1 * jax.random.normal(km, (cout,), jnp.float32),         # mean
                jax.random.uniform(kv, (cout,), jnp.float32, 0.5, 1.5))    # var

    k1, k2, k3, k4 = jax.random.split(key, 4)
    return {
        "block1": conv_bn(k1, channels, 32),
        "block2": conv_bn(k2, 32, 32),
        "linear_w": 0.1 * jax.random.normal(k3, (classes, 32), jnp.float32),
        "linear_b": 0.1 * jax.random.normal(k4, (classes,), jnp.float32),
    }


if __name__ == "__main__":
    key = jax.random.PRNGKey(0)
    batch, channels, spatial, classes = 2, 4, 16, 10

    params = init_params(jax.random.fold_in(key, 1), channels, classes)
    x = jax.random.normal(jax.random.fold_in(key, 2),
                          (batch, channels, spatial, spatial), jnp.float32)

    out = jax.block_until_ready(jax.jit(cnn2_forward)(x, params))
    ref = jax.block_until_ready(cnn2_reference(x, params))

    assert out.shape == (batch, classes), out.shape
    # bf16 matmul inputs (f32 accumulation/epilogue) => compare at 2e-2.
    assert jnp.allclose(out, ref, rtol=2e-2, atol=2e-2), (out, ref)
    print("KERNEL_OK")
</pallas_src>

<mosaic_0001>
module attributes {stable_mosaic.version = 11 : i64} {
  func.func @_cnn2_kernel(%arg0: i32, %arg1: memref<1x256x36xbf16, #tpu.memory_space<vmem>>, %arg2: memref<36x32xbf16, #tpu.memory_space<vmem>>, %arg3: memref<1x32xf32, #tpu.memory_space<vmem>>, %arg4: memref<1x32xf32, #tpu.memory_space<vmem>>, %arg5: memref<9x32x32xbf16, #tpu.memory_space<vmem>>, %arg6: memref<1x32xf32, #tpu.memory_space<vmem>>, %arg7: memref<1x32xf32, #tpu.memory_space<vmem>>, %arg8: memref<32x128xf32, #tpu.memory_space<vmem>>, %arg9: memref<1x128xf32, #tpu.memory_space<vmem>>, %arg10: memref<1x1x128xf32, #tpu.memory_space<vmem>>, %arg11: memref<16x16x32xf32, #tpu.memory_space<vmem>>, %arg12: memref<1x10x10x32xbf16, #tpu.memory_space<vmem>>, %arg13: memref<8x8x32xf32, #tpu.memory_space<vmem>>) attributes {dimension_semantics = [#tpu.dimension_semantics<parallel>], iteration_bounds = array<i64: 2>, scalar_prefetch = 0 : i64, scratch_operands = 3 : i64, tpu.core_type = #tpu.core_type<tc>, window_params = [{transform_indices = @transform_0, window_bounds = array<i64: 1, 256, 36>}, {pipeline_mode = #tpu.pipeline_mode<synchronous>, transform_indices = @transform_1, window_bounds = array<i64: 36, 32>}, {pipeline_mode = #tpu.pipeline_mode<synchronous>, transform_indices = @transform_2, window_bounds = array<i64: 1, 32>}, {pipeline_mode = #tpu.pipeline_mode<synchronous>, transform_indices = @transform_3, window_bounds = array<i64: 1, 32>}, {pipeline_mode = #tpu.pipeline_mode<synchronous>, transform_indices = @transform_4, window_bounds = array<i64: 9, 32, 32>}, {pipeline_mode = #tpu.pipeline_mode<synchronous>, transform_indices = @transform_5, window_bounds = array<i64: 1, 32>}, {pipeline_mode = #tpu.pipeline_mode<synchronous>, transform_indices = @transform_6, window_bounds = array<i64: 1, 32>}, {pipeline_mode = #tpu.pipeline_mode<synchronous>, transform_indices = @transform_7, window_bounds = array<i64: 32, 128>}, {pipeline_mode = #tpu.pipeline_mode<synchronous>, transform_indices = @transform_8, window_bounds = array<i64: 1, 128>}, {transform_indices = @transform_9, window_bounds = array<i64: 1, 1, 128>}]} {
    %c0 = arith.constant 0 : index
    %c0_0 = arith.constant 0 : index
    %c0_1 = arith.constant 0 : index
    %0 = vector.load %arg1[%c0, %c0_0, %c0_1] : memref<1x256x36xbf16, #tpu.memory_space<vmem>>, vector<1x256x36xbf16>
    %1 = vector.shape_cast %0 : vector<1x256x36xbf16> to vector<256x36xbf16>
    %c0_2 = arith.constant 0 : index
    %c0_3 = arith.constant 0 : index
    %2 = vector.load %arg2[%c0_2, %c0_3] : memref<36x32xbf16, #tpu.memory_space<vmem>>, vector<36x32xbf16>
    %cst = arith.constant dense<0.000000e+00> : vector<256x32xf32>
    %3 = tpu.matmul %1, %2, %cst {dimension_numbers = #tpu.dot_dimension_numbers<[1], [0], [0], [1], [0, 0, 1, 1], [], []>} : vector<256x36xbf16>, vector<36x32xbf16>, vector<256x32xf32> -> vector<256x32xf32>
    %c0_4 = arith.constant 0 : index
    %c0_5 = arith.constant 0 : index
    %4 = vector.load %arg3[%c0_4, %c0_5] : memref<1x32xf32, #tpu.memory_space<vmem>>, vector<1x32xf32>
    %5 = vector.broadcast %4 : vector<1x32xf32> to vector<256x32xf32>
    %6 = arith.mulf %3, %5 : vector<256x32xf32>
    %c0_6 = arith.constant 0 : index
    %c0_7 = arith.constant 0 : index
    %7 = vector.load %arg4[%c0_6, %c0_7] : memref<1x32xf32, #tpu.memory_space<vmem>>, vector<1x32xf32>
    %8 = vector.broadcast %7 : vector<1x32xf32> to vector<256x32xf32>
    %9 = arith.addf %6, %8 : vector<256x32xf32>
    %cst_8 = arith.constant 0.000000e+00 : f32
    %10 = vector.broadcast %cst_8 : f32 to vector<256x32xf32>
    %11 = arith.maximumf %9, %10 : vector<256x32xf32>
    %12 = vector.shape_cast %11 : vector<256x32xf32> to vector<16x16x32xf32>
    %c0_9 = arith.constant 0 : index
    %c0_10 = arith.constant 0 : index
    %c0_11 = arith.constant 0 : index
    %13 = vector.load %arg11[%c0_9, %c0_10, %c0_11] : memref<16x16x32xf32, #tpu.memory_space<vmem>>, vector<16x16x32xf32>
    tpu.vector_store %arg11[%c0_9, %c0_10, %c0_11], %12 {strides = array<i32>} : memref<16x16x32xf32, #tpu.memory_space<vmem>>, vector<16x16x32xf32>,
    %c0_12 = arith.constant 0 : index
    %c0_13 = arith.constant 0 : index
    %c0_14 = arith.constant 0 : index
    %14 = tpu.strided_load %arg11[%c0_12, %c0_13, %c0_14] {strides = array<i32: 1, 2, 1>} : memref<16x16x32xf32, #tpu.memory_space<vmem>>, vector<16x8x32xf32>
    %c0_15 = arith.constant 0 : index
    %c1 = arith.constant 1 : index
    %c0_16 = arith.constant 0 : index
    %15 = tpu.strided_load %arg11[%c0_15, %c1, %c0_16] {strides = array<i32: 1, 2, 1>} : memref<16x16x32xf32, #tpu.memory_space<vmem>>, vector<16x8x32xf32>
    %16 = arith.maximumf %14, %15 : vector<16x8x32xf32>
    %17 = vector.shape_cast %16 : vector<16x8x32xf32> to vector<8x2x8x32xf32>
    %18 = vector.extract_strided_slice %17 {offsets = [0, 0, 0, 0], sizes = [8, 1, 8, 32], strides = [1, 1, 1, 1]} : vector<8x2x8x32xf32> to vector<8x1x8x32xf32>
    %19 = vector.shape_cast %18 : vector<8x1x8x32xf32> to vector<8x8x32xf32>
    %20 = vector.extract_strided_slice %17 {offsets = [0, 1, 0, 0], sizes = [8, 1, 8, 32], strides = [1, 1, 1, 1]} : vector<8x2x8x32xf32> to vector<8x1x8x32xf32>
    %21 = vector.shape_cast %20 : vector<8x1x8x32xf32> to vector<8x8x32xf32>
    %22 = arith.maximumf %19, %21 : vector<8x8x32xf32>
    %cst_17 = arith.constant 0.000000e+00 : bf16
    %23 = vector.broadcast %cst_17 : bf16 to vector<1x10x10x32xbf16>
    %c0_18 = arith.constant 0 : index
    %c0_19 = arith.constant 0 : index
    %c0_20 = arith.constant 0 : index
    %c0_21 = arith.constant 0 : index
    %24 = vector.load %arg12[%c0_18, %c0_19, %c0_20, %c0_21] : memref<1x10x10x32xbf16, #tpu.memory_space<vmem>>, vector<1x10x10x32xbf16>
    tpu.vector_store %arg12[%c0_18, %c0_19, %c0_20, %c0_21], %23 {strides = array<i32>} : memref<1x10x10x32xbf16, #tpu.memory_space<vmem>>, vector<1x10x10x32xbf16>,
    %25 = vector.shape_cast %22 : vector<8x8x32xf32> to vector<1x8x8x32xf32>
    %26 = arith.truncf %25 : vector<1x8x8x32xf32> to vector<1x8x8x32xbf16>
    %c0_22 = arith.constant 0 : index
    %c1_23 = arith.constant 1 : index
    %c1_24 = arith.constant 1 : index
    %c0_25 = arith.constant 0 : index
    %27 = vector.load %arg12[%c0_22, %c1_23, %c1_24, %c0_25] : memref<1x10x10x32xbf16, #tpu.memory_space<vmem>>, vector<1x8x8x32xbf16>
    tpu.vector_store %arg12[%c0_22, %c1_23, %c1_24, %c0_25], %26 {strides = array<i32>} : memref<1x10x10x32xbf16, #tpu.memory_space<vmem>>, vector<1x8x8x32xbf16>,
    %cst_26 = arith.constant 0.000000e+00 : f32
    %28 = vector.broadcast %cst_26 : f32 to vector<64x32xf32>
    %c0_27 = arith.constant 0 : index
    %c0_28 = arith.constant 0 : index
    %c0_29 = arith.constant 0 : index
    %c0_30 = arith.constant 0 : index
    %29 = vector.load %arg12[%c0_27, %c0_28, %c0_29, %c0_30] : memref<1x10x10x32xbf16, #tpu.memory_space<vmem>>, vector<1x8x8x32xbf16>
    %30 = vector.shape_cast %29 : vector<1x8x8x32xbf16> to vector<64x32xbf16>
    %c0_31 = arith.constant 0 : index
    %c0_32 = arith.constant 0 : index
    %c0_33 = arith.constant 0 : index
    %31 = vector.load %arg5[%c0_31, %c0_32, %c0_33] : memref<9x32x32xbf16, #tpu.memory_space<vmem>>, vector<1x32x32xbf16>
    %32 = vector.shape_cast %31 : vector<1x32x32xbf16> to vector<32x32xbf16>
    %cst_34 = arith.constant dense<0.000000e+00> : vector<64x32xf32>
    %33 = tpu.matmul %30, %32, %cst_34 {dimension_numbers = #tpu.dot_dimension_numbers<[1], [0], [0], [1], [0, 0, 1, 1], [], []>} : vector<64x32xbf16>, vector<32x32xbf16>, vector<64x32xf32> -> vector<64x32xf32>
    %34 = arith.addf %28, %33 : vector<64x32xf32>
    %c0_35 = arith.constant 0 : index
    %c0_36 = arith.constant 0 : index
    %c1_37 = arith.constant 1 : index
    %c0_38 = arith.constant 0 : index
    %35 = vector.load %arg12[%c0_35, %c0_36, %c1_37, %c0_38] : memref<1x10x10x32xbf16, #tpu.memory_space<vmem>>, vector<1x8x8x32xbf16>
    %36 = vector.shape_cast %35 : vector<1x8x8x32xbf16> to vector<64x32xbf16>
    %c1_39 = arith.constant 1 : index
    %c0_40 = arith.constant 0 : index
    %c0_41 = arith.constant 0 : index
    %37 = vector.load %arg5[%c1_39, %c0_40, %c0_41] : memref<9x32x32xbf16, #tpu.memory_space<vmem>>, vector<1x32x32xbf16>
    %38 = vector.shape_cast %37 : vector<1x32x32xbf16> to vector<32x32xbf16>
    %cst_42 = arith.constant dense<0.000000e+00> : vector<64x32xf32>
    %39 = tpu.matmul %36, %38, %cst_42 {dimension_numbers = #tpu.dot_dimension_numbers<[1], [0], [0], [1], [0, 0, 1, 1], [], []>} : vector<64x32xbf16>, vector<32x32xbf16>, vector<64x32xf32> -> vector<64x32xf32>
    %40 = arith.addf %34, %39 : vector<64x32xf32>
    %c0_43 = arith.constant 0 : index
    %c0_44 = arith.constant 0 : index
    %c2 = arith.constant 2 : index
    %c0_45 = arith.constant 0 : index
    %41 = vector.load %arg12[%c0_43, %c0_44, %c2, %c0_45] : memref<1x10x10x32xbf16, #tpu.memory_space<vmem>>, vector<1x8x8x32xbf16>
    %42 = vector.shape_cast %41 : vector<1x8x8x32xbf16> to vector<64x32xbf16>
    %c2_46 = arith.constant 2 : index
    %c0_47 = arith.constant 0 : index
    %c0_48 = arith.constant 0 : index
    %43 = vector.load %arg5[%c2_46, %c0_47, %c0_48] : memref<9x32x32xbf16, #tpu.memory_space<vmem>>, vector<1x32x32xbf16>
    %44 = vector.shape_cast %43 : vector<1x32x32xbf16> to vector<32x32xbf16>
    %cst_49 = arith.constant dense<0.000000e+00> : vector<64x32xf32>
    %45 = tpu.matmul %42, %44, %cst_49 {dimension_numbers = #tpu.dot_dimension_numbers<[1], [0], [0], [1], [0, 0, 1, 1], [], []>} : vector<64x32xbf16>, vector<32x32xbf16>, vector<64x32xf32> -> vector<64x32xf32>
    %46 = arith.addf %40, %45 : vector<64x32xf32>
    %c0_50 = arith.constant 0 : index
    %c1_51 = arith.constant 1 : index
    %c0_52 = arith.constant 0 : index
    %c0_53 = arith.constant 0 : index
    %47 = vector.load %arg12[%c0_50, %c1_51, %c0_52, %c0_53] : memref<1x10x10x32xbf16, #tpu.memory_space<vmem>>, vector<1x8x8x32xbf16>
    %48 = vector.shape_cast %47 : vector<1x8x8x32xbf16> to vector<64x32xbf16>
    %c3 = arith.constant 3 : index
    %c0_54 = arith.constant 0 : index
    %c0_55 = arith.constant 0 : index
    %49 = vector.load %arg5[%c3, %c0_54, %c0_55] : memref<9x32x32xbf16, #tpu.memory_space<vmem>>, vector<1x32x32xbf16>
    %50 = vector.shape_cast %49 : vector<1x32x32xbf16> to vector<32x32xbf16>
    %cst_56 = arith.constant dense<0.000000e+00> : vector<64x32xf32>
    %51 = tpu.matmul %48, %50, %cst_56 {dimension_numbers = #tpu.dot_dimension_numbers<[1], [0], [0], [1], [0, 0, 1, 1], [], []>} : vector<64x32xbf16>, vector<32x32xbf16>, vector<64x32xf32> -> vector<64x32xf32>
    %52 = arith.addf %46, %51 : vector<64x32xf32>
    %c0_57 = arith.constant 0 : index
    %c1_58 = arith.constant 1 : index
    %c1_59 = arith.constant 1 : index
    %c0_60 = arith.constant 0 : index
    %53 = vector.load %arg12[%c0_57, %c1_58, %c1_59, %c0_60] : memref<1x10x10x32xbf16, #tpu.memory_space<vmem>>, vector<1x8x8x32xbf16>
    %54 = vector.shape_cast %53 : vector<1x8x8x32xbf16> to vector<64x32xbf16>
    %c4 = arith.constant 4 : index
    %c0_61 = arith.constant 0 : index
    %c0_62 = arith.constant 0 : index
    %55 = vector.load %arg5[%c4, %c0_61, %c0_62] : memref<9x32x32xbf16, #tpu.memory_space<vmem>>, vector<1x32x32xbf16>
    %56 = vector.shape_cast %55 : vector<1x32x32xbf16> to vector<32x32xbf16>
    %cst_63 = arith.constant dense<0.000000e+00> : vector<64x32xf32>
    %57 = tpu.matmul %54, %56, %cst_63 {dimension_numbers = #tpu.dot_dimension_numbers<[1], [0], [0], [1], [0, 0, 1, 1], [], []>} : vector<64x32xbf16>, vector<32x32xbf16>, vector<64x32xf32> -> vector<64x32xf32>
    %58 = arith.addf %52, %57 : vector<64x32xf32>
    %c0_64 = arith.constant 0 : index
    %c1_65 = arith.constant 1 : index
    %c2_66 = arith.constant 2 : index
    %c0_67 = arith.constant 0 : index
    %59 = vector.load %arg12[%c0_64, %c1_65, %c2_66, %c0_67] : memref<1x10x10x32xbf16, #tpu.memory_space<vmem>>, vector<1x8x8x32xbf16>
    %60 = vector.shape_cast %59 : vector<1x8x8x32xbf16> to vector<64x32xbf16>
    %c5 = arith.constant 5 : index
    %c0_68 = arith.constant 0 : index
    %c0_69 = arith.constant 0 : index
    %61 = vector.load %arg5[%c5, %c0_68, %c0_69] : memref<9x32x32xbf16, #tpu.memory_space<vmem>>, vector<1x32x32xbf16>
    %62 = vector.shape_cast %61 : vector<1x32x32xbf16> to vector<32x32xbf16>
    %cst_70 = arith.constant dense<0.000000e+00> : vector<64x32xf32>
    %63 = tpu.matmul %60, %62, %cst_70 {dimension_numbers = #tpu.dot_dimension_numbers<[1], [0], [0], [1], [0, 0, 1, 1], [], []>} : vector<64x32xbf16>, vector<32x32xbf16>, vector<64x32xf32> -> vector<64x32xf32>
    %64 = arith.addf %58, %63 : vector<64x32xf32>
    %c0_71 = arith.constant 0 : index
    %c2_72 = arith.constant 2 : index
    %c0_73 = arith.constant 0 : index
    %c0_74 = arith.constant 0 : index
    %65 = vector.load %arg12[%c0_71, %c2_72, %c0_73, %c0_74] : memref<1x10x10x32xbf16, #tpu.memory_space<vmem>>, vector<1x8x8x32xbf16>
    %66 = vector.shape_cast %65 : vector<1x8x8x32xbf16> to vector<64x32xbf16>
    %c6 = arith.constant 6 : index
    %c0_75 = arith.constant 0 : index
    %c0_76 = arith.constant 0 : index
    %67 = vector.load %arg5[%c6, %c0_75, %c0_76] : memref<9x32x32xbf16, #tpu.memory_space<vmem>>, vector<1x32x32xbf16>
    %68 = vector.shape_cast %67 : vector<1x32x32xbf16> to vector<32x32xbf16>
    %cst_77 = arith.constant dense<0.000000e+00> : vector<64x32xf32>
    %69 = tpu.matmul %66, %68, %cst_77 {dimension_numbers = #tpu.dot_dimension_numbers<[1], [0], [0], [1], [0, 0, 1, 1], [], []>} : vector<64x32xbf16>, vector<32x32xbf16>, vector<64x32xf32> -> vector<64x32xf32>
    %70 = arith.addf %64, %69 : vector<64x32xf32>
    %c0_78 = arith.constant 0 : index
    %c2_79 = arith.constant 2 : index
    %c1_80 = arith.constant 1 : index
    %c0_81 = arith.constant 0 : index
    %71 = vector.load %arg12[%c0_78, %c2_79, %c1_80, %c0_81] : memref<1x10x10x32xbf16, #tpu.memory_space<vmem>>, vector<1x8x8x32xbf16>
    %72 = vector.shape_cast %71 : vector<1x8x8x32xbf16> to vector<64x32xbf16>
    %c7 = arith.constant 7 : index
    %c0_82 = arith.constant 0 : index
    %c0_83 = arith.constant 0 : index
    %73 = vector.load %arg5[%c7, %c0_82, %c0_83] : memref<9x32x32xbf16, #tpu.memory_space<vmem>>, vector<1x32x32xbf16>
    %74 = vector.shape_cast %73 : vector<1x32x32xbf16> to vector<32x32xbf16>
    %cst_84 = arith.constant dense<0.000000e+00> : vector<64x32xf32>
    %75 = tpu.matmul %72, %74, %cst_84 {dimension_numbers = #tpu.dot_dimension_numbers<[1], [0], [0], [1], [0, 0, 1, 1], [], []>} : vector<64x32xbf16>, vector<32x32xbf16>, vector<64x32xf32> -> vector<64x32xf32>
    %76 = arith.addf %70, %75 : vector<64x32xf32>
    %c0_85 = arith.constant 0 : index
    %c2_86 = arith.constant 2 : index
    %c2_87 = arith.constant 2 : index
    %c0_88 = arith.constant 0 : index
    %77 = vector.load %arg12[%c0_85, %c2_86, %c2_87, %c0_88] : memref<1x10x10x32xbf16, #tpu.memory_space<vmem>>, vector<1x8x8x32xbf16>
    %78 = vector.shape_cast %77 : vector<1x8x8x32xbf16> to vector<64x32xbf16>
    %c8 = arith.constant 8 : index
    %c0_89 = arith.constant 0 : index
    %c0_90 = arith.constant 0 : index
    %79 = vector.load %arg5[%c8, %c0_89, %c0_90] : memref<9x32x32xbf16, #tpu.memory_space<vmem>>, vector<1x32x32xbf16>
    %80 = vector.shape_cast %79 : vector<1x32x32xbf16> to vector<32x32xbf16>
    %cst_91 = arith.constant dense<0.000000e+00> : vector<64x32xf32>
    %81 = tpu.matmul %78, %80, %cst_91 {dimension_numbers = #tpu.dot_dimension_numbers<[1], [0], [0], [1], [0, 0, 1, 1], [], []>} : vector<64x32xbf16>, vector<32x32xbf16>, vector<64x32xf32> -> vector<64x32xf32>
    %82 = arith.addf %76, %81 : vector<64x32xf32>
    %c0_92 = arith.constant 0 : index
    %c0_93 = arith.constant 0 : index
    %83 = vector.load %arg6[%c0_92, %c0_93] : memref<1x32xf32, #tpu.memory_space<vmem>>, vector<1x32xf32>
    %84 = vector.broadcast %83 : vector<1x32xf32> to vector<64x32xf32>
    %85 = arith.mulf %82, %84 : vector<64x32xf32>
    %c0_94 = arith.constant 0 : index
    %c0_95 = arith.constant 0 : index
    %86 = vector.load %arg7[%c0_94, %c0_95] : memref<1x32xf32, #tpu.memory_space<vmem>>, vector<1x32xf32>
    %87 = vector.broadcast %86 : vector<1x32xf32> to vector<64x32xf32>
    %88 = arith.addf %85, %87 : vector<64x32xf32>
    %cst_96 = arith.constant 0.000000e+00 : f32
    %89 = vector.broadcast %cst_96 : f32 to vector<64x32xf32>
    %90 = arith.maximumf %88, %89 : vector<64x32xf32>
    %91 = vector.shape_cast %90 : vector<64x32xf32> to vector<8x8x32xf32>
    %c0_97 = arith.constant 0 : index
    %c0_98 = arith.constant 0 : index
    %c0_99 = arith.constant 0 : index
    %92 = vector.load %arg13[%c0_97, %c0_98, %c0_99] : memref<8x8x32xf32, #tpu.memory_space<vmem>>, vector<8x8x32xf32>
    tpu.vector_store %arg13[%c0_97, %c0_98, %c0_99], %91 {strides = array<i32>} : memref<8x8x32xf32, #tpu.memory_space<vmem>>, vector<8x8x32xf32>,
    %c0_100 = arith.constant 0 : index
    %c0_101 = arith.constant 0 : index
    %c0_102 = arith.constant 0 : index
    %93 = tpu.strided_load %arg13[%c0_100, %c0_101, %c0_102] {strides = array<i32: 1, 2, 1>} : memref<8x8x32xf32, #tpu.memory_space<vmem>>, vector<8x4x32xf32>
    %c0_103 = arith.constant 0 : index
    %c1_104 = arith.constant 1 : index
    %c0_105 = arith.constant 0 : index
    %94 = tpu.strided_load %arg13[%c0_103, %c1_104, %c0_105] {strides = array<i32: 1, 2, 1>} : memref<8x8x32xf32, #tpu.memory_space<vmem>>, vector<8x4x32xf32>
    %95 = arith.maximumf %93, %94 : vector<8x4x32xf32>
    %96 = vector.shape_cast %95 : vector<8x4x32xf32> to vector<4x2x4x32xf32>
    %97 = vector.extract_strided_slice %96 {offsets = [0, 0, 0, 0], sizes = [4, 1, 4, 32], strides = [1, 1, 1, 1]} : vector<4x2x4x32xf32> to vector<4x1x4x32xf32>
    %98 = vector.shape_cast %97 : vector<4x1x4x32xf32> to vector<4x4x32xf32>
    %99 = vector.extract_strided_slice %96 {offsets = [0, 1, 0, 0], sizes = [4, 1, 4, 32], strides = [1, 1, 1, 1]} : vector<4x2x4x32xf32> to vector<4x1x4x32xf32>
    %100 = vector.shape_cast %99 : vector<4x1x4x32xf32> to vector<4x4x32xf32>
    %101 = arith.maximumf %98, %100 : vector<4x4x32xf32>
    %102 = vector.shape_cast %101 : vector<4x4x32xf32> to vector<1x4x4x32xf32>
    %cst_106 = arith.constant dense<0.000000e+00> : vector<1x4x32xf32>
    %103 = vector.multi_reduction <add>, %102, %cst_106 [1] : vector<1x4x4x32xf32> to vector<1x4x32xf32>
    %cst_107 = arith.constant dense<0.000000e+00> : vector<1x32xf32>
    %104 = vector.multi_reduction <add>, %103, %cst_107 [1] : vector<1x4x32xf32> to vector<1x32xf32>
    %cst_108 = arith.constant 6.250000e-02 : f32
    %105 = vector.broadcast %cst_108 : f32 to vector<1x32xf32>
    %106 = arith.mulf %104, %105 : vector<1x32xf32>
    %c0_109 = arith.constant 0 : index
    %c0_110 = arith.constant 0 : index
    %107 = vector.load %arg8[%c0_109, %c0_110] : memref<32x128xf32, #tpu.memory_space<vmem>>, vector<32x128xf32>
    %cst_111 = arith.constant dense<0.000000e+00> : vector<1x128xf32>
    %108 = tpu.matmul %106, %107, %cst_111 {dimension_numbers = #tpu.dot_dimension_numbers<[1], [0], [0], [1], [0, 0, 1, 1], [], []>} : vector<1x32xf32>, vector<32x128xf32>, vector<1x128xf32> -> vector<1x128xf32>
    %c0_112 = arith.constant 0 : index
    %c0_113 = arith.constant 0 : index
    %109 = vector.load %arg9[%c0_112, %c0_113] : memref<1x128xf32, #tpu.memory_space<vmem>>, vector<1x128xf32>
    %110 = arith.addf %108, %109 : vector<1x128xf32>
    %c0_114 = arith.constant 0 : index
    %c0_115 = arith.constant 0 : index
    %c0_116 = arith.constant 0 : index
    %111 = vector.load %arg10[%c0_114, %c0_115, %c0_116] : memref<1x1x128xf32, #tpu.memory_space<vmem>>, vector<1x1x128xf32>
    %112 = vector.shape_cast %111 : vector<1x1x128xf32> to vector<1x128xf32>
    %113 = vector.shape_cast %110 : vector<1x128xf32> to vector<1x1x128xf32>
    tpu.vector_store %arg10[%c0_114, %c0_115, %c0_116], %113 {strides = array<i32>} : memref<1x1x128xf32, #tpu.memory_space<vmem>>, vector<1x1x128xf32>,
    return
  }
  func.func @transform_0(%arg0: i32) -> (i32, i32, i32) {
    %c0_i32 = arith.constant 0 : i32
    %c0_i32_0 = arith.constant 0 : i32
    %c0_i32_1 = arith.constant 0 : i32
    return %arg0, %c0_i32, %c0_i32_0 : i32, i32, i32
  }
  func.func @transform_1(%arg0: i32) -> (i32, i32) {
    %c0_i32 = arith.constant 0 : i32
    %c0_i32_0 = arith.constant 0 : i32
    %c0_i32_1 = arith.constant 0 : i32
    return %c0_i32, %c0_i32_0 : i32, i32
  }
  func.func @transform_2(%arg0: i32) -> (i32, i32) {
    %c0_i32 = arith.constant 0 : i32
    %c0_i32_0 = arith.constant 0 : i32
    %c0_i32_1 = arith.constant 0 : i32
    return %c0_i32, %c0_i32_0 : i32, i32
  }
  func.func @transform_3(%arg0: i32) -> (i32, i32) {
    %c0_i32 = arith.constant 0 : i32
    %c0_i32_0 = arith.constant 0 : i32
    %c0_i32_1 = arith.constant 0 : i32
    return %c0_i32, %c0_i32_0 : i32, i32
  }
  func.func @transform_4(%arg0: i32) -> (i32, i32, i32) {
    %c0_i32 = arith.constant 0 : i32
    %c0_i32_0 = arith.constant 0 : i32
    %c0_i32_1 = arith.constant 0 : i32
    %c0_i32_2 = arith.constant 0 : i32
    return %c0_i32, %c0_i32_0, %c0_i32_1 : i32, i32, i32
  }
  func.func @transform_5(%arg0: i32) -> (i32, i32) {
    %c0_i32 = arith.constant 0 : i32
    %c0_i32_0 = arith.constant 0 : i32
    %c0_i32_1 = arith.constant 0 : i32
    return %c0_i32, %c0_i32_0 : i32, i32
  }
  func.func @transform_6(%arg0: i32) -> (i32, i32) {
    %c0_i32 = arith.constant 0 : i32
    %c0_i32_0 = arith.constant 0 : i32
    %c0_i32_1 = arith.constant 0 : i32
    return %c0_i32, %c0_i32_0 : i32, i32
  }
  func.func @transform_7(%arg0: i32) -> (i32, i32) {
    %c0_i32 = arith.constant 0 : i32
    %c0_i32_0 = arith.constant 0 : i32
    %c0_i32_1 = arith.constant 0 : i32
    return %c0_i32, %c0_i32_0 : i32, i32
  }
  func.func @transform_8(%arg0: i32) -> (i32, i32) {
    %c0_i32 = arith.constant 0 : i32
    %c0_i32_0 = arith.constant 0 : i32
    %c0_i32_1 = arith.constant 0 : i32
    return %c0_i32, %c0_i32_0 : i32, i32
  }
  func.func @transform_9(%arg0: i32) -> (i32, i32, i32) {
    %c0_i32 = arith.constant 0 : i32
    %c0_i32_0 = arith.constant 0 : i32
    %c0_i32_1 = arith.constant 0 : i32
    return %arg0, %c0_i32, %c0_i32_0 : i32, i32, i32
  }
}

</mosaic_0001>

<llo_original>
// kernel: cnn2_forward.1
$region0: #{cnn2_forward.1}
  #allocation0 [shape = 'u32[]', space=smem, size = 0x4, offset = 0x4, fixed_abs, tag = 'smem constant byte address 0x4 - core index']
  #allocation1 [shape = 'u32[144,128]{1,0:T(1,128)}', space=vmem, size = 0x12000, scoped, tag = 'internal scratch']
  #allocation2 [shape = 'f32[16,16,32]{2,1,0:T(8,128)}', space=vmem, size = 0x20000, scoped, tag = 'scratch operand']
  #allocation3 [shape = 'bf16[1,10,10,32]{3,2,1,0:T(8,128)(2,1)}', space=vmem, size = 0xa000, scoped, tag = 'scratch operand']
  #allocation4 [shape = 'f32[8,8,32]{2,1,0:T(8,128)}', space=vmem, size = 0x8000, scoped, tag = 'scratch operand']
  %s0 = inlined_call_operand.vmem [shape: bf16[2,256,36], index: 0, kind: input, shape index: {}]
  %s1 = inlined_call_operand.vmem [shape: bf16[36,32], index: 1, kind: input, shape index: {}]
  %s2 = inlined_call_operand.vmem [shape: f32[1,32], index: 2, kind: input, shape index: {}]
  %s3 = inlined_call_operand.vmem [shape: f32[1,32], index: 3, kind: input, shape index: {}]
  %s4 = inlined_call_operand.vmem [shape: bf16[9,32,32], index: 4, kind: input, shape index: {}]
  %s5 = inlined_call_operand.vmem [shape: f32[1,32], index: 5, kind: input, shape index: {}]
  %s6 = inlined_call_operand.vmem [shape: f32[1,32], index: 6, kind: input, shape index: {}]
  %s7 = inlined_call_operand.vmem [shape: f32[32,128], index: 7, kind: input, shape index: {}]
  %s8 = inlined_call_operand.vmem [shape: f32[1,128], index: 8, kind: input, shape index: {}]
  %s9 = inlined_call_operand.hbm [shape: f32[2,1,128], index: 9, kind: output, shape index: {}]
  %s10 = sld [smem:[#allocation0]]
  $region69: #{cnn2_forward.1} parent=0
    _
  %s12 = ssub.s32 1, %s10
  %s13 = scalar_select 0, %s12, %s10
  $region1: #{cnn2_forward.1} parent=0
    #allocation5 [shape = 'u8[1024]{0}', space=vmem, size = 0x400, scoped, tag = 'output window, operand 0']
    #allocation6 [shape = 's32[2]{0}', space=sflag, size = 0x8, scoped, tag = 'scoped memory for cnn2_forward.1']
    %14 = vsyncpa [#allocation6], 0
    %s15 = scalar_lea.sflag [#allocation6], 1
    %16 = vsyncpa %s15, 0
    loop: start=0, step=1, limit=4
    $region2: #{cnn2_forward.1} parent=1 // loop_pre_header
      _
    $region3: #{cnn2_forward.1} parent=1 // loop_header
      %s18 = sphi 0, %s22
      %p19 = scmp.ge.s32.totalorder %s18, 4
      %s28 = sphi 0, %s30
      %s31 = sphi 0, %s28
      %s32 = sphi 0, %s31
      %s48 = sphi 0, %s32
      %s52 = sphi 0, %s52
      %s54 = sphi 0, %s52
      %s55 = sphi 0, %s54
      %s69 = sphi 0, %s55
      %s73 = sphi 0, %s73
      %s75 = sphi 0, %s73
      %s76 = sphi 0, %s75
      %s90 = sphi 0, %s76
      %s94 = sphi 0, %s94
      %s96 = sphi 0, %s94
      %s97 = sphi 0, %s96
      %s111 = sphi 0, %s97
      %s115 = sphi 0, %s115
      %s117 = sphi 0, %s115
      %s118 = sphi 0, %s117
      %s132 = sphi 0, %s118
      %s136 = sphi 0, %s136
      %s138 = sphi 0, %s136
      %s139 = sphi 0, %s138
      %s153 = sphi 0, %s139
      %s157 = sphi 0, %s157
      %s159 = sphi 0, %s157
      %s160 = sphi 0, %s159
      %s174 = sphi 0, %s160
      %s178 = sphi 0, %s178
      %s180 = sphi 0, %s178
      %s181 = sphi 0, %s180
      %s195 = sphi 0, %s181
      %s199 = sphi 0, %s199
      %s201 = sphi 0, %s199
      %s202 = sphi 0, %s201
      %s216 = sphi 0, %s202
      %s222 = sphi 0, %s224
      %s225 = sphi 0, %s222
      %s226 = sphi 0, %s225
      %s242 = sphi 0, %s226
    $region4: #{cnn2_forward.1} parent=1 // loop_header_branch
      %21 = sbr.rel (%p19) target = $region8
    $region5: #{cnn2_forward.1} parent=1 // loop_body
      %s23 = ssub.s32 %s18, 1
      %s24 = ssub.s32 %s18, 2
      %s25 = sadd.s32 %s18, 1
      %s26 = ssub.s32 %s18, %s25
      %p27 = scmp.eq.s32.totalorder %s26, 0
      %s29 = sadd.s32 %s28, 1
      %s30 = scalar_select %p27, %s28, %s29
      %p33 = pneg %p27
      %p34 = scmp.eq.s32.totalorder %s18, 1
      %p35 = por %p33, %p34
      %p36 = scmp.ne.s32.totalorder %s28, %s31
      %p37 = scmp.eq.s32.totalorder %s18, 0
      %p38 = por %p36, %p37
      %p39 = scmp.ne.s32.totalorder %s28, %s31
      %p40 = scmp.eq.s32.totalorder %s23, 1
      %p41 = por %p39, %p40
      %p42 = scmp.ne.s32.totalorder %s31, %s32
      %p43 = scmp.eq.s32.totalorder %s23, 0
      %p44 = por %p42, %p43
      %p45 = scmp.ne.s32.totalorder %s31, %s32
      %p46 = scmp.eq.s32.totalorder %s24, 1
      %p47 = por %p45, %p46
      %p49 = scmp.ne.s32.totalorder %s32, %s48
      %p50 = scmp.eq.s32.totalorder %s24, 0
      %p51 = por %p49, %p50
      %s53 = sadd.s32 %s52, 1
      %p56 = scmp.eq.s32.totalorder %s18, 1
      %p57 = scmp.ne.s32.totalorder %s52, %s54
      %p58 = scmp.eq.s32.totalorder %s18, 0
      %p59 = por %p57, %p58
      %p60 = scmp.ne.s32.totalorder %s52, %s54
      %p61 = scmp.eq.s32.totalorder %s23, 1
      %p62 = por %p60, %p61
      %p63 = scmp.ne.s32.totalorder %s54, %s55
      %p64 = scmp.eq.s32.totalorder %s23, 0
      %p65 = por %p63, %p64
      %p66 = scmp.ne.s32.totalorder %s54, %s55
      %p67 = scmp.eq.s32.totalorder %s24, 1
      %p68 = por %p66, %p67
      %p70 = scmp.ne.s32.totalorder %s55, %s69
      %p71 = scmp.eq.s32.totalorder %s24, 0
      %p72 = por %p70, %p71
      %s74 = sadd.s32 %s73, 1
      %p77 = scmp.eq.s32.totalorder %s18, 1
      %p78 = scmp.ne.s32.totalorder %s73, %s75
      %p79 = scmp.eq.s32.totalorder %s18, 0
      %p80 = por %p78, %p79
      %p81 = scmp.ne.s32.totalorder %s73, %s75
      %p82 = scmp.eq.s32.totalorder %s23, 1
      %p83 = por %p81, %p82
      %p84 = scmp.ne.s32.totalorder %s75, %s76
      %p85 = scmp.eq.s32.totalorder %s23, 0
      %p86 = por %p84, %p85
      %p87 = scmp.ne.s32.totalorder %s75, %s76
      %p88 = scmp.eq.s32.totalorder %s24, 1
      %p89 = por %p87, %p88
      %p91 = scmp.ne.s32.totalorder %s76, %s90
      %p92 = scmp.eq.s32.totalorder %s24, 0
      %p93 = por %p91, %p92
      %s95 = sadd.s32 %s94, 1
      %p98 = scmp.eq.s32.totalorder %s18, 1
      %p99 = scmp.ne.s32.totalorder %s94, %s96
      %p100 = scmp.eq.s32.totalorder %s18, 0
      %p101 = por %p99, %p100
      %p102 = scmp.ne.s32.totalorder %s94, %s96
      %p103 = scmp.eq.s32.totalorder %s23, 1
      %p104 = por %p102, %p103
      %p105 = scmp.ne.s32.totalorder %s96, %s97
      %p106 = scmp.eq.s32.totalorder %s23, 0
      %p107 = por %p105, %p106
      %p108 = scmp.ne.s32.totalorder %s96, %s97
      %p109 = scmp.eq.s32.totalorder %s24, 1
      %p110 = por %p108, %p109
      %p112 = scmp.ne.s32.totalorder %s97, %s111
      %p113 = scmp.eq.s32.totalorder %s24, 0
      %p114 = por %p112, %p113
      %s116 = sadd.s32 %s115, 1
      %p119 = scmp.eq.s32.totalorder %s18, 1
      %p120 = scmp.ne.s32.totalorder %s115, %s117
      %p121 = scmp.eq.s32.totalorder %s18, 0
      %p122 = por %p120, %p121
      %p123 = scmp.ne.s32.totalorder %s115, %s117
      %p124 = scmp.eq.s32.totalorder %s23, 1
      %p125 = por %p123, %p124
      %p126 = scmp.ne.s32.totalorder %s117, %s118
      %p127 = scmp.eq.s32.totalorder %s23, 0
      %p128 = por %p126, %p127
      %p129 = scmp.ne.s32.totalorder %s117, %s118
      %p130 = scmp.eq.s32.totalorder %s24, 1
      %p131 = por %p129, %p130
      %p133 = scmp.ne.s32.totalorder %s118, %s132
      %p134 = scmp.eq.s32.totalorder %s24, 0
      %p135 = por %p133, %p134
      %s137 = sadd.s32 %s136, 1
      %p140 = scmp.eq.s32.totalorder %s18, 1
      %p141 = scmp.ne.s32.totalorder %s136, %s138
      %p142 = scmp.eq.s32.totalorder %s18, 0
      %p143 = por %p141, %p142
      %p144 = scmp.ne.s32.totalorder %s136, %s138
      %p145 = scmp.eq.s32.totalorder %s23, 1
      %p146 = por %p144, %p145
      %p147 = scmp.ne.s32.totalorder %s138, %s139
      %p148 = scmp.eq.s32.totalorder %s23, 0
      %p149 = por %p147, %p148
      %p150 = scmp.ne.s32.totalorder %s138, %s139
      %p151 = scmp.eq.s32.totalorder %s24, 1
      %p152 = por %p150, %p151
      %p154 = scmp.ne.s32.totalorder %s139, %s153
      %p155 = scmp.eq.s32.totalorder %s24, 0
      %p156 = por %p154, %p155
      %s158 = sadd.s32 %s157, 1
      %p161 = scmp.eq.s32.totalorder %s18, 1
      %p162 = scmp.ne.s32.totalorder %s157, %s159
      %p163 = scmp.eq.s32.totalorder %s18, 0
      %p164 = por %p162, %p163
      %p165 = scmp.ne.s32.totalorder %s157, %s159
      %p166 = scmp.eq.s32.totalorder %s23, 1
      %p167 = por %p165, %p166
      %p168 = scmp.ne.s32.totalorder %s159, %s160
      %p169 = scmp.eq.s32.totalorder %s23, 0
      %p170 = por %p168, %p169
      %p171 = scmp.ne.s32.totalorder %s159, %s160
      %p172 = scmp.eq.s32.totalorder %s24, 1
      %p173 = por %p171, %p172
      %p175 = scmp.ne.s32.totalorder %s160, %s174
      %p176 = scmp.eq.s32.totalorder %s24, 0
      %p177 = por %p175, %p176
      %s179 = sadd.s32 %s178, 1
      %p182 = scmp.eq.s32.totalorder %s18, 1
      %p183 = scmp.ne.s32.totalorder %s178, %s180
      %p184 = scmp.eq.s32.totalorder %s18, 0
      %p185 = por %p183, %p184
      %p186 = scmp.ne.s32.totalorder %s178, %s180
      %p187 = scmp.eq.s32.totalorder %s23, 1
      %p188 = por %p186, %p187
      %p189 = scmp.ne.s32.totalorder %s180, %s181
      %p190 = scmp.eq.s32.totalorder %s23, 0
      %p191 = por %p189, %p190
      %p192 = scmp.ne.s32.totalorder %s180, %s181
      %p193 = scmp.eq.s32.totalorder %s24, 1
      %p194 = por %p192, %p193
      %p196 = scmp.ne.s32.totalorder %s181, %s195
      %p197 = scmp.eq.s32.totalorder %s24, 0
      %p198 = por %p196, %p197
      %s200 = sadd.s32 %s199, 1
      %p203 = scmp.eq.s32.totalorder %s18, 1
      %p204 = scmp.ne.s32.totalorder %s199, %s201
      %p205 = scmp.eq.s32.totalorder %s18, 0
      %p206 = por %p204, %p205
      %p207 = scmp.ne.s32.totalorder %s199, %s201
      %p208 = scmp.eq.s32.totalorder %s23, 1
      %p209 = por %p207, %p208
      %p210 = scmp.ne.s32.totalorder %s201, %s202
      %p211 = scmp.eq.s32.totalorder %s23, 0
      %p212 = por %p210, %p211
      %p213 = scmp.ne.s32.totalorder %s201, %s202
      %p214 = scmp.eq.s32.totalorder %s24, 1
      %p215 = por %p213, %p214
      %p217 = scmp.ne.s32.totalorder %s202, %s216
      %p218 = scmp.eq.s32.totalorder %s24, 0
      %p219 = por %p217, %p218
      %s220 = ssub.s32 %s18, %s25
      %p221 = scmp.eq.s32.totalorder %s220, 0
      %s223 = sadd.s32 %s222, 1
      %s224 = scalar_select %p221, %s222, %s223
      %p227 = pneg %p221
      %p228 = scmp.eq.s32.totalorder %s18, 1
      %p229 = por %p227, %p228
      %p230 = scmp.ne.s32.totalorder %s222, %s225
      %p231 = scmp.eq.s32.totalorder %s18, 0
      %p232 = por %p230, %p231
      %p233 = scmp.ne.s32.totalorder %s222, %s225
      %p234 = scmp.eq.s32.totalorder %s23, 1
      %p235 = por %p233, %p234
      %p236 = scmp.ne.s32.totalorder %s225, %s226
      %p237 = scmp.eq.s32.totalorder %s23, 0
      %p238 = por %p236, %p237
      %p239 = scmp.ne.s32.totalorder %s225, %s226
      %p240 = scmp.eq.s32.totalorder %s24, 1
      %p241 = por %p239, %p240
      %p243 = scmp.ne.s32.totalorder %s226, %s242
      %p244 = scmp.eq.s32.totalorder %s24, 0
      %p245 = por %p243, %p244
      %p246 = scmp.le.s32.totalorder 1, %s18
      %p247 = scmp.lt.s32.totalorder %s18, 3
      %p248 = pnand %p246, %p247
      %p249 = pneg %p248
      // Predicated region
      $region9: #{cnn2_forward.1} parent=5 // pred_check
        _
      $region10: #{cnn2_forward.1} parent=5 // pred_check_branch
        %251 = sbr.rel (%p248) target = $region12
      $region11: #{cnn2_forward.1} parent=5 // pred_region
        %s252 = ssub.s32 %s18, 1
        // Predicated region
        $region13: #{cnn2_forward.1} parent=11 // pred_check
          %p253 = pneg %p65
        $region14: #{cnn2_forward.1} parent=11 // pred_check_branch
          %255 = sbr.rel (%p253) target = $region16
        $region15: #{cnn2_forward.1} parent=11 // pred_region
          _
        $region16: #{cnn2_forward.1} parent=11 // pred_fallthru
          _
        // Predicated region
        $region17: #{cnn2_forward.1} parent=11 // pred_check
          %p256 = pneg %p86
        $region18: #{cnn2_forward.1} parent=11 // pred_check_branch
          %258 = sbr.rel (%p256) target = $region20
        $region19: #{cnn2_forward.1} parent=11 // pred_region
          _
        $region20: #{cnn2_forward.1} parent=11 // pred_fallthru
          _
        // Predicated region
        $region21: #{cnn2_forward.1} parent=11 // pred_check
          %p259 = pneg %p107
        $region22: #{cnn2_forward.1} parent=11 // pred_check_branch
          %261 = sbr.rel (%p259) target = $region24
        $region23: #{cnn2_forward.1} parent=11 // pred_region
          _
        $region24: #{cnn2_forward.1} parent=11 // pred_fallthru
          _
        // Predicated region
        $region25: #{cnn2_forward.1} parent=11 // pred_check
          %p262 = pneg %p128
        $region26: #{cnn2_forward.1} parent=11 // pred_check_branch
          %264 = sbr.rel (%p262) target = $region28
        $region27: #{cnn2_forward.1} parent=11 // pred_region
          _
        $region28: #{cnn2_forward.1} parent=11 // pred_fallthru
          _
        // Predicated region
        $region29: #{cnn2_forward.1} parent=11 // pred_check
          %p265 = pneg %p149
        $region30: #{cnn2_forward.1} parent=11 // pred_check_branch
          %267 = sbr.rel (%p265) target = $region32
        $region31: #{cnn2_forward.1} parent=11 // pred_region
          _
        $region32: #{cnn2_forward.1} parent=11 // pred_fallthru
          _
        // Predicated region
        $region33: #{cnn2_forward.1} parent=11 // pred_check
          %p268 = pneg %p170
        $region34: #{cnn2_forward.1} parent=11 // pred_check_branch
          %270 = sbr.rel (%p268) target = $region36
        $region35: #{cnn2_forward.1} parent=11 // pred_region
          _
        $region36: #{cnn2_forward.1} parent=11 // pred_fallthru
          _
        // Predicated region
        $region37: #{cnn2_forward.1} parent=11 // pred_check
          %p271 = pneg %p191
        $region38: #{cnn2_forward.1} parent=11 // pred_check_branch
          %273 = sbr.rel (%p271) target = $region40
        $region39: #{cnn2_forward.1} parent=11 // pred_region
          _
        $region40: #{cnn2_forward.1} parent=11 // pred_fallthru
          _
        // Predicated region
        $region41: #{cnn2_forward.1} parent=11 // pred_check
          %p274 = pneg %p212
        $region42: #{cnn2_forward.1} parent=11 // pred_check_branch
          %276 = sbr.rel (%p274) target = $region44
        $region43: #{cnn2_forward.1} parent=11 // pred_region
          _
        $region44: #{cnn2_forward.1} parent=11 // pred_fallthru
          _
      $region12: #{cnn2_forward.1} parent=5 // pred_fallthru
        _
      %p277 = scmp.lt.s32.totalorder %s18, 2
      // Predicated region
      $region45: #{cnn2_forward.1} parent=5 // pred_check
        %p278 = pneg %p277
      $region46: #{cnn2_forward.1} parent=5 // pred_check_branch
        %280 = sbr.rel (%p278) target = $region48
      $region47: #{cnn2_forward.1} parent=5 // pred_region
        // Predicated region
        $region49: #{cnn2_forward.1} parent=47 // pred_check
          %p281 = pneg %p38
        $region50: #{cnn2_forward.1} parent=47 // pred_check_branch
          %283 = sbr.rel (%p281) target = $region52
        $region51: #{cnn2_forward.1} parent=47 // pred_region
          %p284 = scmp.lt.s32.totalorder %s18, 1
          %s285 = scalar_select %p284, %s18, 1
          %s286 = smul.addr %s285, 32
          %s287 = smul.addr %s286, 4
          %s288 = scalar_lea.vmem %s0, %s287
        $region52: #{cnn2_forward.1} parent=47 // pred_fallthru
          _
      $region48: #{cnn2_forward.1} parent=5 // pred_fallthru
        _
      %p289 = scmp.le.s32.totalorder 1, %s18
      %p290 = scmp.lt.s32.totalorder %s18, 3
      %p291 = pnand %p289, %p290
      %p292 = pneg %p291
      // Predicated region
      $region53: #{cnn2_forward.1} parent=5 // pred_check
        _
      $region54: #{cnn2_forward.1} parent=5 // pred_check_branch
        %294 = sbr.rel (%p291) target = $region56
      $region55: #{cnn2_forward.1} parent=5 // pred_region
        %s295 = ssub.s32 %s18, 1
        %p296 = scmp.lt.s32.totalorder %s23, 1
        %s297 = scalar_select %p296, %s23, 1
        %s298 = smul.addr %s297, 32
        %s299 = smul.addr %s298, 4
        %s300 = scalar_lea.vmem %s0, %s299
        %p301 = pneg %p44
        %p302 = pneg %p41
        %p303 = pneg %p65
        %p304 = pneg %p62
        %p305 = pneg %p86
        %p306 = pneg %p83
        %p307 = pneg %p107
        %p308 = pneg %p104
        %p309 = pneg %p128
        %p310 = pneg %p125
        %p311 = pneg %p149
        %p312 = pneg %p146
        %p313 = pneg %p170
        %p314 = pneg %p167
        %p315 = pneg %p191
        %p316 = pneg %p188
        %p317 = pneg %p212
        %p318 = pneg %p209
        %p319 = pneg %p238
        %p320 = pneg %p235
        %s321 = sand.u32 %s225, 1
        %s322 = scalar_lea.sflag [#allocation6], %s321
        %s323 = sand.u32 %s225, 1
        %s324 = scalar_lea.vmem [#allocation5], %s323
        %p325 = scmp.lt.s32.totalorder %s23, 1
        %s326 = scalar_select %p325, %s23, 1
        %s327 = smul.addr %s326, 32
        %s328 = smul.addr %s327, 4
        %s329 = scalar_lea.vmem %s0, %s328
        %v331 = vld [vmem:[%s329] sm:$0xf]
        %v332 = vld [vmem:[%s329 + $0x4] sm:$0xf]
        %v333 = vld [vmem:[%s329 + $0x8] sm:$0xf]
        %v334 = vld [vmem:[%s329 + $0xc] sm:$0xf]
        %v335 = vld [vmem:[%s329 + $0x10] sm:$0xf]
        %v336 = vld [vmem:[%s329 + $0x14] sm:$0xf]
        %v337 = vld [vmem:[%s329 + $0x18] sm:$0xf]
        %v338 = vld [vmem:[%s329 + $0x1c] sm:$0xf]
        %v339 = vld [vmem:[%s329 + $0x20] sm:$0xf]
        %v340 = vld [vmem:[%s329 + $0x24] sm:$0xf]
        %v341 = vld [vmem:[%s329 + $0x28] sm:$0xf]
        %v342 = vld [vmem:[%s329 + $0x2c] sm:$0xf]
        %v343 = vld [vmem:[%s329 + $0x30] sm:$0xf]
        %v344 = vld [vmem:[%s329 + $0x34] sm:$0xf]
        %v345 = vld [vmem:[%s329 + $0x38] sm:$0xf]
        %v346 = vld [vmem:[%s329 + $0x3c] sm:$0xf]
        %v347 = vld [vmem:[%s329 + $0x40] sm:$0xf]
        %v348 = vld [vmem:[%s329 + $0x44] sm:$0xf]
        %v349 = vld [vmem:[%s329 + $0x48] sm:$0xf]
        %v350 = vld [vmem:[%s329 + $0x4c] sm:$0xf]
        %v351 = vld [vmem:[%s329 + $0x50] sm:$0xf]
        %v352 = vld [vmem:[%s329 + $0x54] sm:$0xf]
        %v353 = vld [vmem:[%s329 + $0x58] sm:$0xf]
        %v354 = vld [vmem:[%s329 + $0x5c] sm:$0xf]
        %v355 = vld [vmem:[%s329 + $0x60] sm:$0xf]
        %v356 = vld [vmem:[%s329 + $0x64] sm:$0xf]
        %v357 = vld [vmem:[%s329 + $0x68] sm:$0xf]
        %v358 = vld [vmem:[%s329 + $0x6c] sm:$0xf]
        %v359 = vld [vmem:[%s329 + $0x70] sm:$0xf]
        %v360 = vld [vmem:[%s329 + $0x74] sm:$0xf]
        %v361 = vld [vmem:[%s329 + $0x78] sm:$0xf]
        %v362 = vld [vmem:[%s329 + $0x7c] sm:$0xf]
        %v363 = vld [vmem:[%s1] sm:$0xf]
        %v364 = vld [vmem:[%s1 + $0x4] sm:$0xf]
        %v365 = vld [vmem:[%s1 + $0x8] sm:$0xf]
        %v366 = vld [vmem:[%s1 + $0xc] sm:$0xf]
        %v367 = vld [vmem:[%s1 + $0x10] sm:$0x3]
        %v400 = vunpack.c.l.b16 %v331
        %v401 = vunpack.c.l.b16 %v332
        %v402 = vunpack.c.l.b16 %v333
        %v403 = vunpack.c.l.b16 %v334
        %v404 = vunpack.c.l.b16 %v335
        %v405 = vunpack.c.l.b16 %v336
        %v406 = vunpack.c.l.b16 %v337
        %v407 = vunpack.c.l.b16 %v338
        %v408 = vunpack.c.l.b16 %v339
        %v409 = vunpack.c.l.b16 %v340
        %v410 = vunpack.c.l.b16 %v341
        %v411 = vunpack.c.l.b16 %v342
        %v412 = vunpack.c.l.b16 %v343
        %v413 = vunpack.c.l.b16 %v344
        %v414 = vunpack.c.l.b16 %v345
        %v415 = vunpack.c.l.b16 %v346
        %v416 = vunpack.c.l.b16 %v347
        %v417 = vunpack.c.l.b16 %v348
        %v418 = vunpack.c.l.b16 %v349
        %v419 = vunpack.c.l.b16 %v350
        %v420 = vunpack.c.l.b16 %v351
        %v421 = vunpack.c.l.b16 %v352
        %v422 = vunpack.c.l.b16 %v353
        %v423 = vunpack.c.l.b16 %v354
        %v424 = vunpack.c.l.b16 %v355
        %v425 = vunpack.c.l.b16 %v356
        %v426 = vunpack.c.l.b16 %v357
        %v427 = vunpack.c.l.b16 %v358
        %v428 = vunpack.c.l.b16 %v359
        %v429 = vunpack.c.l.b16 %v360
        %v430 = vunpack.c.l.b16 %v361
        %v431 = vunpack.c.l.b16 %v362
        %v432 = vpack.c.b16 %v401, %v400
        %v433 = vpack.c.b16 %v403, %v402
        %v434 = vpack.c.b16 %v405, %v404
        %v435 = vpack.c.b16 %v407, %v406
        %v436 = vpack.c.b16 %v409, %v408
        %v437 = vpack.c.b16 %v411, %v410
        %v438 = vpack.c.b16 %v413, %v412
        %v439 = vpack.c.b16 %v415, %v414
        %v440 = vpack.c.b16 %v417, %v416
        %v441 = vpack.c.b16 %v419, %v418
        %v442 = vpack.c.b16 %v421, %v420
        %v443 = vpack.c.b16 %v423, %v422
        %v444 = vpack.c.b16 %v425, %v424
        %v445 = vpack.c.b16 %v427, %v426
        %v446 = vpack.c.b16 %v429, %v428
        %v447 = vpack.c.b16 %v431, %v430
        %v453 = vunpack.c.l.b16 %v363
        %v454 = vunpack.c.l.b16 %v364
        %v455 = vunpack.c.l.b16 %v365
        %v456 = vunpack.c.l.b16 %v366
        %v457 = vunpack.c.l.b16 %v367
        %v458 = vpack.c.b16 %v454, %v453
        %v459 = vpack.c.b16 %v456, %v455
        %v460 = vpack.c.b16 %v457, %v457
        %vm463 = vcmask 293888
        %v465 = vsel %vm463, %v432, 0
        %v468 = vsel %vm463, %v433, 0
        %v471 = vsel %vm463, %v434, 0
        %v474 = vsel %vm463, %v435, 0
        %v477 = vsel %vm463, %v436, 0
        %v480 = vsel %vm463, %v437, 0
        %v483 = vsel %vm463, %v438, 0
        %v486 = vsel %vm463, %v439, 0
        %v489 = vsel %vm463, %v440, 0
        %v492 = vsel %vm463, %v441, 0
        %v495 = vsel %vm463, %v442, 0
        %v498 = vsel %vm463, %v443, 0
        %v501 = vsel %vm463, %v444, 0
        %v504 = vsel %vm463, %v445, 0
        %v507 = vsel %vm463, %v446, 0
        %v510 = vsel %vm463, %v447, 0
        %vm512 = vcmask 1041408
        %v514 = vsel %vm512, %v460, 0
        %516 = vmatprep.subr.bf16.mxu0 0
        %517 = vmatpush1.bf16.msra.mxu0 0
        %518 = vmatprep.subr.bf16.mxu0 0
        %519 = vmatpush1.bf16.msra.mxu0 0
        %520 = vmatprep.subr.bf16.mxu0 0
        %521 = vmatpush1.bf16.msra.mxu0 0
        %522 = vmatprep.subr.bf16.mxu0 0
        %523 = vmatpush1.bf16.msra.mxu0 0
        %524 = vmatprep.subr.bf16.mxu0 0
        %525 = vmatpush1.bf16.msra.mxu0 0
        %526 = vmatprep.subr.bf16.mxu0 0
        %527 = vmatpush1.bf16.msra.mxu0 %v514
        %528 = vmatprep.subr.bf16.mxu0 0
        %529 = vmatpush1.bf16.msra.mxu0 %v459
        %530 = vmatprep.subr.bf16.mxu0 0
        %531 = vmatpush1.bf16.msra.mxu0 %v458
        %532 = vmatprep.subr.bf16.mxu0 0
        %533 = vmatpush2.bf16.msra.mxu0 0
        %534 = vmatprep.subr.bf16.mxu0 0
        %535 = vmatpush2.bf16.msra.mxu0 0
        %536 = vmatprep.subr.bf16.mxu0 0
        %537 = vmatpush2.bf16.msra.mxu0 0
        %538 = vmatprep.subr.bf16.mxu0 0
        %539 = vmatpush2.bf16.msra.mxu0 0
        %540 = vmatprep.subr.bf16.mxu0 0
        %541 = vmatpush2.bf16.msra.mxu0 0
        %542 = vmatprep.subr.bf16.mxu0 0
        %543 = vmatpush2.bf16.msra.mxu0 0
        %544 = vmatprep.subr.bf16.mxu0 0
        %545 = vmatpush2.bf16.msra.mxu0 0
        %546 = vmatprep.subr.bf16.mxu0 0
        %547 = vmatpush2.bf16.msra.mxu0 0
        %548 = vmatprep.mubr.bf16.mxu0 0
        %549 = vmatmul.mubr.bf16.gmra.mxu0 %v465
        %v550 = vpop.f32.mrf.mxu0
        %v551 = vadd.f32 0.0, %v550
        %v552 = vpop.f32.mrf.mxu0
        %v553 = vpop.f32.mrf.mxu0
        %v554 = vadd.f32 0.0, %v553
        %v555 = vpop.f32.mrf.mxu0
        %556 = vmatprep.mubr.bf16.mxu0 0
        %557 = vmatmul.mubr.bf16.gmra.mxu0 %v468
        %v558 = vpop.f32.mrf.mxu0
        %v559 = vadd.f32 0.0, %v558
        %v560 = vpop.f32.mrf.mxu0
        %v561 = vpop.f32.mrf.mxu0
        %v562 = vadd.f32 0.0, %v561
        %v563 = vpop.f32.mrf.mxu0
        %564 = vmatprep.mubr.bf16.mxu0 0
        %565 = vmatmul.mubr.bf16.gmra.mxu0 %v471
        %v566 = vpop.f32.mrf.mxu0
        %v567 = vadd.f32 0.0, %v566
        %v568 = vpop.f32.mrf.mxu0
        %v569 = vpop.f32.mrf.mxu0
        %v570 = vadd.f32 0.0, %v569
        %v571 = vpop.f32.mrf.mxu0
        %572 = vmatprep.mubr.bf16.mxu0 0
        %573 = vmatmul.mubr.bf16.gmra.mxu0 %v474
        %v574 = vpop.f32.mrf.mxu0
        %v575 = vadd.f32 0.0, %v574
        %v576 = vpop.f32.mrf.mxu0
        %v577 = vpop.f32.mrf.mxu0
        %v578 = vadd.f32 0.0, %v577
        %v579 = vpop.f32.mrf.mxu0
        %580 = vmatprep.mubr.bf16.mxu0 0
        %581 = vmatmul.mubr.bf16.gmra.mxu0 %v477
        %v582 = vpop.f32.mrf.mxu0
        %v583 = vadd.f32 0.0, %v582
        %v584 = vpop.f32.mrf.mxu0
        %v585 = vpop.f32.mrf.mxu0
        %v586 = vadd.f32 0.0, %v585
        %v587 = vpop.f32.mrf.mxu0
        %588 = vmatprep.mubr.bf16.mxu0 0
        %589 = vmatmul.mubr.bf16.gmra.mxu0 %v480
        %v590 = vpop.f32.mrf.mxu0
        %v591 = vadd.f32 0.0, %v590
        %v592 = vpop.f32.mrf.mxu0
        %v593 = vpop.f32.mrf.mxu0
        %v594 = vadd.f32 0.0, %v593
        %v595 = vpop.f32.mrf.mxu0
        %596 = vmatprep.mubr.bf16.mxu0 0
        %597 = vmatmul.mubr.bf16.gmra.mxu0 %v483
        %v598 = vpop.f32.mrf.mxu0
        %v599 = vadd.f32 0.0, %v598
        %v600 = vpop.f32.mrf.mxu0
        %v601 = vpop.f32.mrf.mxu0
        %v602 = vadd.f32 0.0, %v601
        %v603 = vpop.f32.mrf.mxu0
        %604 = vmatprep.mubr.bf16.mxu0 0
        %605 = vmatmul.mubr.bf16.gmra.mxu0 %v486
        %v606 = vpop.f32.mrf.mxu0
        %v607 = vadd.f32 0.0, %v606
        %v608 = vpop.f32.mrf.mxu0
        %v609 = vpop.f32.mrf.mxu0
        %v610 = vadd.f32 0.0, %v609
        %v611 = vpop.f32.mrf.mxu0
        %612 = vmatprep.mubr.bf16.mxu0 0
        %613 = vmatmul.mubr.bf16.gmra.mxu0 %v489
        %v614 = vpop.f32.mrf.mxu0
        %v615 = vadd.f32 0.0, %v614
        %v616 = vpop.f32.mrf.mxu0
        %v617 = vpop.f32.mrf.mxu0
        %v618 = vadd.f32 0.0, %v617
        %v619 = vpop.f32.mrf.mxu0
        %620 = vmatprep.mubr.bf16.mxu0 0
        %621 = vmatmul.mubr.bf16.gmra.mxu0 %v492
        %v622 = vpop.f32.mrf.mxu0
        %v623 = vadd.f32 0.0, %v622
        %v624 = vpop.f32.mrf.mxu0
        %v625 = vpop.f32.mrf.mxu0
        %v626 = vadd.f32 0.0, %v625
        %v627 = vpop.f32.mrf.mxu0
        %628 = vmatprep.mubr.bf16.mxu0 0
        %629 = vmatmul.mubr.bf16.gmra.mxu0 %v495
        %v630 = vpop.f32.mrf.mxu0
        %v631 = vadd.f32 0.0, %v630
        %v632 = vpop.f32.mrf.mxu0
        %v633 = vpop.f32.mrf.mxu0
        %v634 = vadd.f32 0.0, %v633
        %v635 = vpop.f32.mrf.mxu0
        %636 = vmatprep.mubr.bf16.mxu0 0
        %637 = vmatmul.mubr.bf16.gmra.mxu0 %v498
        %v638 = vpop.f32.mrf.mxu0
        %v639 = vadd.f32 0.0, %v638
        %v640 = vpop.f32.mrf.mxu0
        %v641 = vpop.f32.mrf.mxu0
        %v642 = vadd.f32 0.0, %v641
        %v643 = vpop.f32.mrf.mxu0
        %644 = vmatprep.mubr.bf16.mxu0 0
        %645 = vmatmul.mubr.bf16.gmra.mxu0 %v501
        %v646 = vpop.f32.mrf.mxu0
        %v647 = vadd.f32 0.0, %v646
        %v648 = vpop.f32.mrf.mxu0
        %v649 = vpop.f32.mrf.mxu0
        %v650 = vadd.f32 0.0, %v649
        %v651 = vpop.f32.mrf.mxu0
        %652 = vmatprep.mubr.bf16.mxu0 0
        %653 = vmatmul.mubr.bf16.gmra.mxu0 %v504
        %v654 = vpop.f32.mrf.mxu0
        %v655 = vadd.f32 0.0, %v654
        %v656 = vpop.f32.mrf.mxu0
        %v657 = vpop.f32.mrf.mxu0
        %v658 = vadd.f32 0.0, %v657
        %v659 = vpop.f32.mrf.mxu0
        %660 = vmatprep.mubr.bf16.mxu0 0
        %661 = vmatmul.mubr.bf16.gmra.mxu0 %v507
        %v662 = vpop.f32.mrf.mxu0
        %v663 = vadd.f32 0.0, %v662
        %v664 = vpop.f32.mrf.mxu0
        %v665 = vpop.f32.mrf.mxu0
        %v666 = vadd.f32 0.0, %v665
        %v667 = vpop.f32.mrf.mxu0
        %668 = vmatprep.mubr.bf16.mxu0 0
        %669 = vmatmul.mubr.bf16.gmra.mxu0 %v510
        %v670 = vpop.f32.mrf.mxu0
        %v671 = vadd.f32 0.0, %v670
        %v672 = vpop.f32.mrf.mxu0
        %v673 = vpop.f32.mrf.mxu0
        %v674 = vadd.f32 0.0, %v673
        %v675 = vpop.f32.mrf.mxu0
        %676 = vdwg.mxu0
        %v677 = vld [vmem:[%s2] sm:$0x1]
        %v679 = vlaneseq
        %v680 = vshrl.u32 %v679, 7
        %v681 = vsub.s32 0, %v680
        %v682 = vrot.slane %v677, %v681
        %v684 = vmul.f32 %v551, %v682
        %v685 = vmul.f32 %v554, %v682
        %v686 = vmul.f32 %v559, %v682
        %v687 = vmul.f32 %v562, %v682
        %v688 = vmul.f32 %v567, %v682
        %v689 = vmul.f32 %v570, %v682
        %v690 = vmul.f32 %v575, %v682
        %v691 = vmul.f32 %v578, %v682
        %v692 = vmul.f32 %v583, %v682
        %v693 = vmul.f32 %v586, %v682
        %v694 = vmul.f32 %v591, %v682
        %v695 = vmul.f32 %v594, %v682
        %v696 = vmul.f32 %v599, %v682
        %v697 = vmul.f32 %v602, %v682
        %v698 = vmul.f32 %v607, %v682
        %v699 = vmul.f32 %v610, %v682
        %v700 = vmul.f32 %v615, %v682
        %v701 = vmul.f32 %v618, %v682
        %v702 = vmul.f32 %v623, %v682
        %v703 = vmul.f32 %v626, %v682
        %v704 = vmul.f32 %v631, %v682
        %v705 = vmul.f32 %v634, %v682
        %v706 = vmul.f32 %v639, %v682
        %v707 = vmul.f32 %v642, %v682
        %v708 = vmul.f32 %v647, %v682
        %v709 = vmul.f32 %v650, %v682
        %v710 = vmul.f32 %v655, %v682
        %v711 = vmul.f32 %v658, %v682
        %v712 = vmul.f32 %v663, %v682
        %v713 = vmul.f32 %v666, %v682
        %v714 = vmul.f32 %v671, %v682
        %v715 = vmul.f32 %v674, %v682
        %v716 = vld [vmem:[%s3] sm:$0x1]
        %v718 = vlaneseq
        %v719 = vshrl.u32 %v718, 7
        %v720 = vsub.s32 0, %v719
        %v721 = vrot.slane %v716, %v720
        %v723 = vadd.f32 %v684, %v721
        %v724 = vadd.f32 %v685, %v721
        %v725 = vadd.f32 %v686, %v721
        %v726 = vadd.f32 %v687, %v721
        %v727 = vadd.f32 %v688, %v721
        %v728 = vadd.f32 %v689, %v721
        %v729 = vadd.f32 %v690, %v721
        %v730 = vadd.f32 %v691, %v721
        %v731 = vadd.f32 %v692, %v721
        %v732 = vadd.f32 %v693, %v721
        %v733 = vadd.f32 %v694, %v721
        %v734 = vadd.f32 %v695, %v721
        %v735 = vadd.f32 %v696, %v721
        %v736 = vadd.f32 %v697, %v721
        %v737 = vadd.f32 %v698, %v721
        %v738 = vadd.f32 %v699, %v721
        %v739 = vadd.f32 %v700, %v721
        %v740 = vadd.f32 %v701, %v721
        %v741 = vadd.f32 %v702, %v721
        %v742 = vadd.f32 %v703, %v721
        %v743 = vadd.f32 %v704, %v721
        %v744 = vadd.f32 %v705, %v721
        %v745 = vadd.f32 %v706, %v721
        %v746 = vadd.f32 %v707, %v721
        %v747 = vadd.f32 %v708, %v721
        %v748 = vadd.f32 %v709, %v721
        %v749 = vadd.f32 %v710, %v721
        %v750 = vadd.f32 %v711, %v721
        %v751 = vadd.f32 %v712, %v721
        %v752 = vadd.f32 %v713, %v721
        %v753 = vadd.f32 %v714, %v721
        %v754 = vadd.f32 %v715, %v721
        %v755 = vmax.f32 %v723, 0.0
        %v756 = vmax.f32 %v724, 0.0
        %v757 = vmax.f32 %v725, 0.0
        %v758 = vmax.f32 %v726, 0.0
        %v759 = vmax.f32 %v727, 0.0
        %v760 = vmax.f32 %v728, 0.0
        %v761 = vmax.f32 %v729, 0.0
        %v762 = vmax.f32 %v730, 0.0
        %v763 = vmax.f32 %v731, 0.0
        %v764 = vmax.f32 %v732, 0.0
        %v765 = vmax.f32 %v733, 0.0
        %v766 = vmax.f32 %v734, 0.0
        %v767 = vmax.f32 %v735, 0.0
        %v768 = vmax.f32 %v736, 0.0
        %v769 = vmax.f32 %v737, 0.0
        %v770 = vmax.f32 %v738, 0.0
        %v771 = vmax.f32 %v739, 0.0
        %v772 = vmax.f32 %v740, 0.0
        %v773 = vmax.f32 %v741, 0.0
        %v774 = vmax.f32 %v742, 0.0
        %v775 = vmax.f32 %v743, 0.0
        %v776 = vmax.f32 %v744, 0.0
        %v777 = vmax.f32 %v745, 0.0
        %v778 = vmax.f32 %v746, 0.0
        %v779 = vmax.f32 %v747, 0.0
        %v780 = vmax.f32 %v748, 0.0
        %v781 = vmax.f32 %v749, 0.0
        %v782 = vmax.f32 %v750, 0.0
        %v783 = vmax.f32 %v751, 0.0
        %v784 = vmax.f32 %v752, 0.0
        %v785 = vmax.f32 %v753, 0.0
        %v786 = vmax.f32 %v754, 0.0
        %vm787 = vcmask 261120
        %788 = vst.msk [vmem:[#allocation2] sm:$0xff] %vm787, %v755
        %789 = vst.msk [vmem:[#allocation2 + $0x8] sm:$0xff] %vm787, %v756
        %790 = vst.msk [vmem:[#allocation2 + $0x10] sm:$0xff] %vm787, %v757
        %791 = vst.msk [vmem:[#allocation2 + $0x18] sm:$0xff] %vm787, %v758
        %792 = vst.msk [vmem:[#allocation2 + $0x20] sm:$0xff] %vm787, %v759
        %793 = vst.msk [vmem:[#allocation2 + $0x28] sm:$0xff] %vm787, %v760
        %794 = vst.msk [vmem:[#allocation2 + $0x30] sm:$0xff] %vm787, %v761
        %795 = vst.msk [vmem:[#allocation2 + $0x38] sm:$0xff] %vm787, %v762
        %796 = vst.msk [vmem:[#allocation2 + $0x40] sm:$0xff] %vm787, %v763
        %797 = vst.msk [vmem:[#allocation2 + $0x48] sm:$0xff] %vm787, %v764
        %798 = vst.msk [vmem:[#allocation2 + $0x50] sm:$0xff] %vm787, %v765
        %799 = vst.msk [vmem:[#allocation2 + $0x58] sm:$0xff] %vm787, %v766
        %800 = vst.msk [vmem:[#allocation2 + $0x60] sm:$0xff] %vm787, %v767
        %801 = vst.msk [vmem:[#allocation2 + $0x68] sm:$0xff] %vm787, %v768
        %802 = vst.msk [vmem:[#allocation2 + $0x70] sm:$0xff] %vm787, %v769
        %803 = vst.msk [vmem:[#allocation2 + $0x78] sm:$0xff] %vm787, %v770
        %804 = vst.msk [vmem:[#allocation2 + $0x80] sm:$0xff] %vm787, %v771
        %805 = vst.msk [vmem:[#allocation2 + $0x88] sm:$0xff] %vm787, %v772
        %806 = vst.msk [vmem:[#allocation2 + $0x90] sm:$0xff] %vm787, %v773
        %807 = vst.msk [vmem:[#allocation2 + $0x98] sm:$0xff] %vm787, %v774
        %808 = vst.msk [vmem:[#allocation2 + $0xa0] sm:$0xff] %vm787, %v775
        %809 = vst.msk [vmem:[#allocation2 + $0xa8] sm:$0xff] %vm787, %v776
        %810 = vst.msk [vmem:[#allocation2 + $0xb0] sm:$0xff] %vm787, %v777
        %811 = vst.msk [vmem:[#allocation2 + $0xb8] sm:$0xff] %vm787, %v778
        %812 = vst.msk [vmem:[#allocation2 + $0xc0] sm:$0xff] %vm787, %v779
        %813 = vst.msk [vmem:[#allocation2 + $0xc8] sm:$0xff] %vm787, %v780
        %814 = vst.msk [vmem:[#allocation2 + $0xd0] sm:$0xff] %vm787, %v781
        %815 = vst.msk [vmem:[#allocation2 + $0xd8] sm:$0xff] %vm787, %v782
        %816 = vst.msk [vmem:[#allocation2 + $0xe0] sm:$0xff] %vm787, %v783
        %817 = vst.msk [vmem:[#allocation2 + $0xe8] sm:$0xff] %vm787, %v784
        %818 = vst.msk [vmem:[#allocation2 + $0xf0] sm:$0xff] %vm787, %v785
        %819 = vst.msk [vmem:[#allocation2 + $0xf8] sm:$0xff] %vm787, %v786
        %v820 = vld [vmem:[#allocation2] ss:$2 sm:$0xff]
        %s821 = scalar_lea.vmem [#allocation2], 16
        %v822 = vld [vmem:[%s821] ss:$2 sm:$0xff]
        %s823 = scalar_lea.vmem [#allocation2], 32
        %v824 = vld [vmem:[%s823] ss:$2 sm:$0xff]
        %s825 = scalar_lea.vmem [#allocation2], 48
        %v826 = vld [vmem:[%s825] ss:$2 sm:$0xff]
        %s827 = scalar_lea.vmem [#allocation2], 64
        %v828 = vld [vmem:[%s827] ss:$2 sm:$0xff]
        %s829 = scalar_lea.vmem [#allocation2], 80
        %v830 = vld [vmem:[%s829] ss:$2 sm:$0xff]
        %s831 = scalar_lea.vmem [#allocation2], 96
        %v832 = vld [vmem:[%s831] ss:$2 sm:$0xff]
        %s833 = scalar_lea.vmem [#allocation2], 112
        %v834 = vld [vmem:[%s833] ss:$2 sm:$0xff]
        %s835 = scalar_lea.vmem [#allocation2], 128
        %v836 = vld [vmem:[%s835] ss:$2 sm:$0xff]
        %s837 = scalar_lea.vmem [#allocation2], 144
        %v838 = vld [vmem:[%s837] ss:$2 sm:$0xff]
        %s839 = scalar_lea.vmem [#allocation2], 160
        %v840 = vld [vmem:[%s839] ss:$2 sm:$0xff]
        %s841 = scalar_lea.vmem [#allocation2], 176
        %v842 = vld [vmem:[%s841] ss:$2 sm:$0xff]
        %s843 = scalar_lea.vmem [#allocation2], 192
        %v844 = vld [vmem:[%s843] ss:$2 sm:$0xff]
        %s845 = scalar_lea.vmem [#allocation2], 208
        %v846 = vld [vmem:[%s845] ss:$2 sm:$0xff]
        %s847 = scalar_lea.vmem [#allocation2], 224
        %v848 = vld [vmem:[%s847] ss:$2 sm:$0xff]
        %s849 = scalar_lea.vmem [#allocation2], 240
        %v850 = vld [vmem:[%s849] ss:$2 sm:$0xff]
        %s851 = scalar_lea.vmem [#allocation2], 1
        %v852 = vld [vmem:[%s851] ss:$2 sm:$0xff]
        %s853 = scalar_lea.vmem [#allocation2], 17
        %v854 = vld [vmem:[%s853] ss:$2 sm:$0xff]
        %s855 = scalar_lea.vmem [#allocation2], 33
        %v856 = vld [vmem:[%s855] ss:$2 sm:$0xff]
        %s857 = scalar_lea.vmem [#allocation2], 49
        %v858 = vld [vmem:[%s857] ss:$2 sm:$0xff]
        %s859 = scalar_lea.vmem [#allocation2], 65
        %v860 = vld [vmem:[%s859] ss:$2 sm:$0xff]
        %s861 = scalar_lea.vmem [#allocation2], 81
        %v862 = vld [vmem:[%s861] ss:$2 sm:$0xff]
        %s863 = scalar_lea.vmem [#allocation2], 97
        %v864 = vld [vmem:[%s863] ss:$2 sm:$0xff]
        %s865 = scalar_lea.vmem [#allocation2], 113
        %v866 = vld [vmem:[%s865] ss:$2 sm:$0xff]
        %s867 = scalar_lea.vmem [#allocation2], 129
        %v868 = vld [vmem:[%s867] ss:$2 sm:$0xff]
        %s869 = scalar_lea.vmem [#allocation2], 145
        %v870 = vld [vmem:[%s869] ss:$2 sm:$0xff]
        %s871 = scalar_lea.vmem [#allocation2], 161
        %v872 = vld [vmem:[%s871] ss:$2 sm:$0xff]
        %s873 = scalar_lea.vmem [#allocation2], 177
        %v874 = vld [vmem:[%s873] ss:$2 sm:$0xff]
        %s875 = scalar_lea.vmem [#allocation2], 193
        %v876 = vld [vmem:[%s875] ss:$2 sm:$0xff]
        %s877 = scalar_lea.vmem [#allocation2], 209
        %v878 = vld [vmem:[%s877] ss:$2 sm:$0xff]
        %s879 = scalar_lea.vmem [#allocation2], 225
        %v880 = vld [vmem:[%s879] ss:$2 sm:$0xff]
        %s881 = scalar_lea.vmem [#allocation2], 241
        %v882 = vld [vmem:[%s881] ss:$2 sm:$0xff]
        %v883 = vmax.f32 %v820, %v852
        %v884 = vmax.f32 %v822, %v854
        %v885 = vmax.f32 %v824, %v856
        %v886 = vmax.f32 %v826, %v858
        %v887 = vmax.f32 %v828, %v860
        %v888 = vmax.f32 %v830, %v862
        %v889 = vmax.f32 %v832, %v864
        %v890 = vmax.f32 %v834, %v866
        %v891 = vmax.f32 %v836, %v868
        %v892 = vmax.f32 %v838, %v870
        %v893 = vmax.f32 %v840, %v872
        %v894 = vmax.f32 %v842, %v874
        %v895 = vmax.f32 %v844, %v876
        %v896 = vmax.f32 %v846, %v878
        %v897 = vmax.f32 %v848, %v880
        %v898 = vmax.f32 %v850, %v882
        %v899 = vmax.f32 %v883, %v884
        %v900 = vmax.f32 %v885, %v886
        %v901 = vmax.f32 %v887, %v888
        %v902 = vmax.f32 %v889, %v890
        %v903 = vmax.f32 %v891, %v892
        %v904 = vmax.f32 %v893, %v894
        %v905 = vmax.f32 %v895, %v896
        %v906 = vmax.f32 %v897, %v898
        %vm907 = vcmask 257024
        %908 = vst.msk [vmem:[#allocation3] sm:$0xf] %vm907, 0
        %vm909 = vcmask 253952
        %910 = vst.msk [vmem:[#allocation3 + $0x4] sm:$0x1] %vm909, 0
        %911 = vst.msk [vmem:[#allocation3 + $0x8] sm:$0xf] %vm907, 0
        %912 = vst.msk [vmem:[#allocation3 + $0xc] sm:$0x1] %vm909, 0
        %913 = vst.msk [vmem:[#allocation3 + $0x10] sm:$0xf] %vm907, 0
        %914 = vst.msk [vmem:[#allocation3 + $0x14] sm:$0x1] %vm909, 0
        %915 = vst.msk [vmem:[#allocation3 + $0x18] sm:$0xf] %vm907, 0
        %916 = vst.msk [vmem:[#allocation3 + $0x1c] sm:$0x1] %vm909, 0
        %917 = vst.msk [vmem:[#allocation3 + $0x20] sm:$0xf] %vm907, 0
        %918 = vst.msk [vmem:[#allocation3 + $0x24] sm:$0x1] %vm909, 0
        %919 = vst.msk [vmem:[#allocation3 + $0x28] sm:$0xf] %vm907, 0
        %920 = vst.msk [vmem:[#allocation3 + $0x2c] sm:$0x1] %vm909, 0
        %921 = vst.msk [vmem:[#allocation3 + $0x30] sm:$0xf] %vm907, 0
        %922 = vst.msk [vmem:[#allocation3 + $0x34] sm:$0x1] %vm909, 0
        %923 = vst.msk [vmem:[#allocation3 + $0x38] sm:$0xf] %vm907, 0
        %924 = vst.msk [vmem:[#allocation3 + $0x3c] sm:$0x1] %vm909, 0
        %925 = vst.msk [vmem:[#allocation3 + $0x40] sm:$0xf] %vm907, 0
        %926 = vst.msk [vmem:[#allocation3 + $0x44] sm:$0x1] %vm909, 0
        %927 = vst.msk [vmem:[#allocation3 + $0x48] sm:$0xf] %vm907, 0
        %928 = vst.msk [vmem:[#allocation3 + $0x4c] sm:$0x1] %vm909, 0
        %v929 = vpack.c.bf16 %v899, %v899
        %v930 = vpack.c.bf16 %v900, %v900
        %v931 = vpack.c.bf16 %v901, %v901
        %v932 = vpack.c.bf16 %v902, %v902
        %v933 = vpack.c.bf16 %v903, %v903
        %v934 = vpack.c.bf16 %v904, %v904
        %v935 = vpack.c.bf16 %v905, %v905
        %v936 = vpack.c.bf16 %v906, %v906
        %v945 = vunpack.c.l.b16 %v929
        %v946 = vunpack.c.l.b16 %v930
        %v947 = vunpack.c.l.b16 %v931
        %v948 = vunpack.c.l.b16 %v932
        %v949 = vunpack.c.l.b16 %v933
        %v950 = vunpack.c.l.b16 %v934
        %v951 = vunpack.c.l.b16 %v935
        %v952 = vunpack.c.l.b16 %v936
        %v953 = vpack.c.b16 %v945, %v945
        %v954 = vpack.c.b16 %v946, %v946
        %v955 = vpack.c.b16 %v947, %v947
        %v956 = vpack.c.b16 %v948, %v948
        %v957 = vpack.c.b16 %v949, %v949
        %v958 = vpack.c.b16 %v950, %v950
        %v959 = vpack.c.b16 %v951, %v951
        %v960 = vpack.c.b16 %v952, %v952
        %v962 = vshrl.u32 %v953, 16
        %v964 = vrot.slane %v962, 7
        %v965 = vshll.u32 %v953, 16
        %v967 = vor.u32 %v964, %v965
        %v968 = vrot.slane %v964, 4
        %v970 = vshrl.u32 %v954, 16
        %v972 = vrot.slane %v970, 7
        %v973 = vshll.u32 %v954, 16
        %v975 = vor.u32 %v972, %v973
        %v976 = vrot.slane %v972, 4
        %v978 = vshrl.u32 %v955, 16
        %v980 = vrot.slane %v978, 7
        %v981 = vshll.u32 %v955, 16
        %v983 = vor.u32 %v980, %v981
        %v984 = vrot.slane %v980, 4
        %v986 = vshrl.u32 %v956, 16
        %v988 = vrot.slane %v986, 7
        %v989 = vshll.u32 %v956, 16
        %v991 = vor.u32 %v988, %v989
        %v992 = vrot.slane %v988, 4
        %v994 = vshrl.u32 %v957, 16
        %v996 = vrot.slane %v994, 7
        %v997 = vshll.u32 %v957, 16
        %v999 = vor.u32 %v996, %v997
        %v1000 = vrot.slane %v996, 4
        %v1002 = vshrl.u32 %v958, 16
        %v1004 = vrot.slane %v1002, 7
        %v1005 = vshll.u32 %v958, 16
        %v1007 = vor.u32 %v1004, %v1005
        %v1008 = vrot.slane %v1004, 4
        %v1010 = vshrl.u32 %v959, 16
        %v1012 = vrot.slane %v1010, 7
        %v1013 = vshll.u32 %v959, 16
        %v1015 = vor.u32 %v1012, %v1013
        %v1016 = vrot.slane %v1012, 4
        %v1018 = vshrl.u32 %v960, 16
        %v1020 = vrot.slane %v1018, 7
        %v1021 = vshll.u32 %v960, 16
        %v1023 = vor.u32 %v1020, %v1021
        %v1024 = vrot.slane %v1020, 4
        %s1041 = scalar_lea.vmem [#allocation3], 8
        %vm1042 = vcmask 257024
        %vm1043 = vsmask.f32 7938
        %vm1044 = vmand %vm1042, %vm1043
        %v1045 = vld [vmem:[%s1041] sm:$0xf]
        %v1046 = vsel %vm1044, %v967, %v1045
        %1047 = vst [vmem:[%s1041] sm:$0xf] %v1046
        %vm1048 = vcmask 253952
        %vm1049 = vsmask.f32 256
        %vm1050 = vmand %vm1048, %vm1049
        %v1051 = vld [vmem:[%s1041 + $0x4] sm:$0x1]
        %v1052 = vsel %vm1050, %v968, %v1051
        %1053 = vst [vmem:[%s1041 + $0x4] sm:$0x1] %v1052
        %v1054 = vld [vmem:[%s1041 + $0x8] sm:$0xf]
        %v1055 = vsel %vm1044, %v975, %v1054
        %1056 = vst [vmem:[%s1041 + $0x8] sm:$0xf] %v1055
        %v1057 = vld [vmem:[%s1041 + $0xc] sm:$0x1]
        %v1058 = vsel %vm1050, %v976, %v1057
        %1059 = vst [vmem:[%s1041 + $0xc] sm:$0x1] %v1058
        %v1060 = vld [vmem:[%s1041 + $0x10] sm:$0xf]
        %v1061 = vsel %vm1044, %v983, %v1060
        %1062 = vst [vmem:[%s1041 + $0x10] sm:$0xf] %v1061
        %v1063 = vld [vmem:[%s1041 + $0x14] sm:$0x1]
        %v1064 = vsel %vm1050, %v984, %v1063
        %1065 = vst [vmem:[%s1041 + $0x14] sm:$0x1] %v1064
        %v1066 = vld [vmem:[%s1041 + $0x18] sm:$0xf]
        %v1067 = vsel %vm1044, %v991, %v1066
        %1068 = vst [vmem:[%s1041 + $0x18] sm:$0xf] %v1067
        %v1069 = vld [vmem:[%s1041 + $0x1c] sm:$0x1]
        %v1070 = vsel %vm1050, %v992, %v1069
        %1071 = vst [vmem:[%s1041 + $0x1c] sm:$0x1] %v1070
        %v1072 = vld [vmem:[%s1041 + $0x20] sm:$0xf]
        %v1073 = vsel %vm1044, %v999, %v1072
        %1074 = vst [vmem:[%s1041 + $0x20] sm:$0xf] %v1073
        %v1075 = vld [vmem:[%s1041 + $0x24] sm:$0x1]
        %v1076 = vsel %vm1050, %v1000, %v1075
        %1077 = vst [vmem:[%s1041 + $0x24] sm:$0x1] %v1076
        %v1078 = vld [vmem:[%s1041 + $0x28] sm:$0xf]
        %v1079 = vsel %vm1044, %v1007, %v1078
        %1080 = vst [vmem:[%s1041 + $0x28] sm:$0xf] %v1079
        %v1081 = vld [vmem:[%s1041 + $0x2c] sm:$0x1]
        %v1082 = vsel %vm1050, %v1008, %v1081
        %1083 = vst [vmem:[%s1041 + $0x2c] sm:$0x1] %v1082
        %v1084 = vld [vmem:[%s1041 + $0x30] sm:$0xf]
        %v1085 = vsel %vm1044, %v1015, %v1084
        %1086 = vst [vmem:[%s1041 + $0x30] sm:$0xf] %v1085
        %v1087 = vld [vmem:[%s1041 + $0x34] sm:$0x1]
        %v1088 = vsel %vm1050, %v1016, %v1087
        %1089 = vst [vmem:[%s1041 + $0x34] sm:$0x1] %v1088
        %v1090 = vld [vmem:[%s1041 + $0x38] sm:$0xf]
        %v1091 = vsel %vm1044, %v1023, %v1090
        %1092 = vst [vmem:[%s1041 + $0x38] sm:$0xf] %v1091
        %v1093 = vld [vmem:[%s1041 + $0x3c] sm:$0x1]
        %v1094 = vsel %vm1050, %v1024, %v1093
        %1095 = vst [vmem:[%s1041 + $0x3c] sm:$0x1] %v1094
        %v1096 = vld [vmem:[#allocation3] sm:$0xf]
        %v1097 = vld [vmem:[#allocation3 + $0x8] sm:$0xf]
        %v1098 = vld [vmem:[#allocation3 + $0x10] sm:$0xf]
        %v1099 = vld [vmem:[#allocation3 + $0x18] sm:$0xf]
        %v1100 = vld [vmem:[#allocation3 + $0x20] sm:$0xf]
        %v1101 = vld [vmem:[#allocation3 + $0x28] sm:$0xf]
        %v1102 = vld [vmem:[#allocation3 + $0x30] sm:$0xf]
        %v1103 = vld [vmem:[#allocation3 + $0x38] sm:$0xf]
        %v1104 = vld [vmem:[%s4] sm:$0xf]
        %v1105 = vld [vmem:[%s4 + $0x4] sm:$0xf]
        %v1106 = vld [vmem:[%s4 + $0x8] sm:$0xf]
        %v1107 = vld [vmem:[%s4 + $0xc] sm:$0xf]
        %v1108 = vld [vmem:[#allocation3 + $0x4] sm:$0x1]
        %v1109 = vld [vmem:[#allocation3 + $0xc] sm:$0x1]
        %v1110 = vld [vmem:[#allocation3 + $0x14] sm:$0x1]
        %v1111 = vld [vmem:[#allocation3 + $0x1c] sm:$0x1]
        %v1112 = vld [vmem:[#allocation3 + $0x24] sm:$0x1]
        %v1113 = vld [vmem:[#allocation3 + $0x2c] sm:$0x1]
        %v1114 = vld [vmem:[#allocation3 + $0x34] sm:$0x1]
        %v1115 = vld [vmem:[#allocation3 + $0x3c] sm:$0x1]
        %vm1116 = vsmask.f32 3328
        %vm1117 = vsmask.f32 7440
        %vm1118 = vmor %vm1116, %vm1117
        %v1120 = vshrl.u32 %v1096, 16
        %v1122 = vrot.slane %v1120, 4
        %v1123 = vshll.u32 %v1096, 16
        %v1125 = vrot.slane %v1123, 5
        %v1126 = vor.u32 %v1122, %v1125
        %v1127 = vrot.slane %v1126, 4
        %v1129 = vshll.u32 %v1108, 16
        %v1131 = vrot.slane %v1129, 5
        %v1132 = vsel %vm1118, %v1127, %v1131
        %v1134 = vshrl.u32 %v1097, 16
        %v1136 = vrot.slane %v1134, 4
        %v1137 = vshll.u32 %v1097, 16
        %v1139 = vrot.slane %v1137, 5
        %v1140 = vor.u32 %v1136, %v1139
        %v1141 = vrot.slane %v1140, 4
        %v1143 = vshll.u32 %v1109, 16
        %v1145 = vrot.slane %v1143, 5
        %v1146 = vsel %vm1118, %v1141, %v1145
        %v1148 = vshrl.u32 %v1098, 16
        %v1150 = vrot.slane %v1148, 4
        %v1151 = vshll.u32 %v1098, 16
        %v1153 = vrot.slane %v1151, 5
        %v1154 = vor.u32 %v1150, %v1153
        %v1155 = vrot.slane %v1154, 4
        %v1157 = vshll.u32 %v1110, 16
        %v1159 = vrot.slane %v1157, 5
        %v1160 = vsel %vm1118, %v1155, %v1159
        %v1162 = vshrl.u32 %v1099, 16
        %v1164 = vrot.slane %v1162, 4
        %v1165 = vshll.u32 %v1099, 16
        %v1167 = vrot.slane %v1165, 5
        %v1168 = vor.u32 %v1164, %v1167
        %v1169 = vrot.slane %v1168, 4
        %v1171 = vshll.u32 %v1111, 16
        %v1173 = vrot.slane %v1171, 5
        %v1174 = vsel %vm1118, %v1169, %v1173
        %v1176 = vshrl.u32 %v1100, 16
        %v1178 = vrot.slane %v1176, 4
        %v1179 = vshll.u32 %v1100, 16
        %v1181 = vrot.slane %v1179, 5
        %v1182 = vor.u32 %v1178, %v1181
        %v1183 = vrot.slane %v1182, 4
        %v1185 = vshll.u32 %v1112, 16
        %v1187 = vrot.slane %v1185, 5
        %v1188 = vsel %vm1118, %v1183, %v1187
        %v1190 = vshrl.u32 %v1101, 16
        %v1192 = vrot.slane %v1190, 4
        %v1193 = vshll.u32 %v1101, 16
        %v1195 = vrot.slane %v1193, 5
        %v1196 = vor.u32 %v1192, %v1195
        %v1197 = vrot.slane %v1196, 4
        %v1199 = vshll.u32 %v1113, 16
        %v1201 = vrot.slane %v1199, 5
        %v1202 = vsel %vm1118, %v1197, %v1201
        %v1204 = vshrl.u32 %v1102, 16
        %v1206 = vrot.slane %v1204, 4
        %v1207 = vshll.u32 %v1102, 16
        %v1209 = vrot.slane %v1207, 5
        %v1210 = vor.u32 %v1206, %v1209
        %v1211 = vrot.slane %v1210, 4
        %v1213 = vshll.u32 %v1114, 16
        %v1215 = vrot.slane %v1213, 5
        %v1216 = vsel %vm1118, %v1211, %v1215
        %v1218 = vshrl.u32 %v1103, 16
        %v1220 = vrot.slane %v1218, 4
        %v1221 = vshll.u32 %v1103, 16
        %v1223 = vrot.slane %v1221, 5
        %v1224 = vor.u32 %v1220, %v1223
        %v1225 = vrot.slane %v1224, 4
        %v1227 = vshll.u32 %v1115, 16
        %v1229 = vrot.slane %v1227, 5
        %v1230 = vsel %vm1118, %v1225, %v1229
        %s1231 = scalar_lea.vmem %s4, 16
        %v1232 = vld [vmem:[%s1231] sm:$0xf]
        %v1233 = vld [vmem:[%s1231 + $0x4] sm:$0xf]
        %v1234 = vld [vmem:[%s1231 + $0x8] sm:$0xf]
        %v1235 = vld [vmem:[%s1231 + $0xc] sm:$0xf]
        %v1236 = vunpack.c.l.b16 %v1132
        %v1237 = vunpack.c.l.b16 %v1146
        %v1238 = vunpack.c.l.b16 %v1160
        %v1239 = vunpack.c.l.b16 %v1174
        %v1240 = vunpack.c.l.b16 %v1188
        %v1241 = vunpack.c.l.b16 %v1202
        %v1242 = vunpack.c.l.b16 %v1216
        %v1243 = vunpack.c.l.b16 %v1230
        %v1244 = vpack.c.b16 %v1237, %v1236
        %v1245 = vpack.c.b16 %v1239, %v1238
        %v1246 = vpack.c.b16 %v1241, %v1240
        %v1247 = vpack.c.b16 %v1243, %v1242
        %v1252 = vunpack.c.l.b16 %v1232
        %v1253 = vunpack.c.l.b16 %v1233
        %v1254 = vunpack.c.l.b16 %v1234
        %v1255 = vunpack.c.l.b16 %v1235
        %v1256 = vpack.c.b16 %v1253, %v1252
        %v1257 = vpack.c.b16 %v1255, %v1254
        %v1261 = vsel %vm787, %v1244, 0
        %v1264 = vsel %vm787, %v1245, 0
        %v1267 = vsel %vm787, %v1246, 0
        %v1270 = vsel %vm787, %v1247, 0
        %1272 = vmatprep.subr.bf16.mxu0 0
        %1273 = vmatpush1.bf16.msra.mxu0 0
        %1274 = vmatprep.subr.bf16.mxu0 0
        %1275 = vmatpush1.bf16.msra.mxu0 0
        %1276 = vmatprep.subr.bf16.mxu0 0
        %1277 = vmatpush1.bf16.msra.mxu0 0
        %1278 = vmatprep.subr.bf16.mxu0 0
        %1279 = vmatpush1.bf16.msra.mxu0 0
        %1280 = vmatprep.subr.bf16.mxu0 0
        %1281 = vmatpush1.bf16.msra.mxu0 0
        %1282 = vmatprep.subr.bf16.mxu0 0
        %1283 = vmatpush1.bf16.msra.mxu0 0
        %1284 = vmatprep.subr.bf16.mxu0 0
        %1285 = vmatpush1.bf16.msra.mxu0 %v1257
        %1286 = vmatprep.subr.bf16.mxu0 0
        %1287 = vmatpush1.bf16.msra.mxu0 %v1256
        %1288 = vmatprep.subr.bf16.mxu0 0
        %1289 = vmatpush2.bf16.msra.mxu0 0
        %1290 = vmatprep.subr.bf16.mxu0 0
        %1291 = vmatpush2.bf16.msra.mxu0 0
        %1292 = vmatprep.subr.bf16.mxu0 0
        %1293 = vmatpush2.bf16.msra.mxu0 0
        %1294 = vmatprep.subr.bf16.mxu0 0
        %1295 = vmatpush2.bf16.msra.mxu0 0
        %1296 = vmatprep.subr.bf16.mxu0 0
        %1297 = vmatpush2.bf16.msra.mxu0 0
        %1298 = vmatprep.subr.bf16.mxu0 0
        %1299 = vmatpush2.bf16.msra.mxu0 0
        %1300 = vmatprep.subr.bf16.mxu0 0
        %1301 = vmatpush2.bf16.msra.mxu0 0
        %1302 = vmatprep.subr.bf16.mxu0 0
        %1303 = vmatpush2.bf16.msra.mxu0 0
        %1304 = vmatprep.mubr.bf16.mxu0 0
        %1305 = vmatmul.mubr.bf16.gmra.mxu0 %v1261
        %v1306 = vpop.f32.mrf.mxu0
        %v1307 = vadd.f32 0.0, %v1306
        %v1308 = vpop.f32.mrf.mxu0
        %v1309 = vpop.f32.mrf.mxu0
        %v1310 = vadd.f32 0.0, %v1309
        %v1311 = vpop.f32.mrf.mxu0
        %1312 = vmatprep.mubr.bf16.mxu0 0
        %1313 = vmatmul.mubr.bf16.gmra.mxu0 %v1264
        %v1314 = vpop.f32.mrf.mxu0
        %v1315 = vadd.f32 0.0, %v1314
        %v1316 = vpop.f32.mrf.mxu0
        %v1317 = vpop.f32.mrf.mxu0
        %v1318 = vadd.f32 0.0, %v1317
        %v1319 = vpop.f32.mrf.mxu0
        %1320 = vmatprep.mubr.bf16.mxu0 0
        %1321 = vmatmul.mubr.bf16.gmra.mxu0 %v1267
        %v1322 = vpop.f32.mrf.mxu0
        %v1323 = vadd.f32 0.0, %v1322
        %v1324 = vpop.f32.mrf.mxu0
        %v1325 = vpop.f32.mrf.mxu0
        %v1326 = vadd.f32 0.0, %v1325
        %v1327 = vpop.f32.mrf.mxu0
        %1328 = vmatprep.mubr.bf16.mxu0 0
        %1329 = vmatmul.mubr.bf16.gmra.mxu0 %v1270
        %v1330 = vpop.f32.mrf.mxu0
        %v1331 = vadd.f32 0.0, %v1330
        %v1332 = vpop.f32.mrf.mxu0
        %v1333 = vpop.f32.mrf.mxu0
        %v1334 = vadd.f32 0.0, %v1333
        %v1335 = vpop.f32.mrf.mxu0
        %1336 = vdwg.mxu0
        %v1345 = vunpack.c.l.b16 %v1096
        %v1346 = vunpack.c.l.b16 %v1097
        %v1347 = vunpack.c.l.b16 %v1098
        %v1348 = vunpack.c.l.b16 %v1099
        %v1349 = vunpack.c.l.b16 %v1100
        %v1350 = vunpack.c.l.b16 %v1101
        %v1351 = vunpack.c.l.b16 %v1102
        %v1352 = vunpack.c.l.b16 %v1103
        %v1353 = vpack.c.b16 %v1346, %v1345
        %v1354 = vpack.c.b16 %v1348, %v1347
        %v1355 = vpack.c.b16 %v1350, %v1349
        %v1356 = vpack.c.b16 %v1352, %v1351
        %v1361 = vunpack.c.l.b16 %v1104
        %v1362 = vunpack.c.l.b16 %v1105
        %v1363 = vunpack.c.l.b16 %v1106
        %v1364 = vunpack.c.l.b16 %v1107
        %v1365 = vpack.c.b16 %v1362, %v1361
        %v1366 = vpack.c.b16 %v1364, %v1363
        %v1370 = vsel %vm787, %v1353, 0
        %v1373 = vsel %vm787, %v1354, 0
        %v1376 = vsel %vm787, %v1355, 0
        %v1379 = vsel %vm787, %v1356, 0
        %1381 = vmatprep.subr.bf16.mxu0 0
        %1382 = vmatpush1.bf16.msra.mxu0 0
        %1383 = vmatprep.subr.bf16.mxu0 0
        %1384 = vmatpush1.bf16.msra.mxu0 0
        %1385 = vmatprep.subr.bf16.mxu0 0
        %1386 = vmatpush1.bf16.msra.mxu0 0
        %1387 = vmatprep.subr.bf16.mxu0 0
        %1388 = vmatpush1.bf16.msra.mxu0 0
        %1389 = vmatprep.subr.bf16.mxu0 0
        %1390 = vmatpush1.bf16.msra.mxu0 0
        %1391 = vmatprep.subr.bf16.mxu0 0
        %1392 = vmatpush1.bf16.msra.mxu0 0
        %1393 = vmatprep.subr.bf16.mxu0 0
        %1394 = vmatpush1.bf16.msra.mxu0 %v1366
        %1395 = vmatprep.subr.bf16.mxu0 0
        %1396 = vmatpush1.bf16.msra.mxu0 %v1365
        %1397 = vmatprep.subr.bf16.mxu0 0
        %1398 = vmatpush2.bf16.msra.mxu0 0
        %1399 = vmatprep.subr.bf16.mxu0 0
        %1400 = vmatpush2.bf16.msra.mxu0 0
        %1401 = vmatprep.subr.bf16.mxu0 0
        %1402 = vmatpush2.bf16.msra.mxu0 0
        %1403 = vmatprep.subr.bf16.mxu0 0
        %1404 = vmatpush2.bf16.msra.mxu0 0
        %1405 = vmatprep.subr.bf16.mxu0 0
        %1406 = vmatpush2.bf16.msra.mxu0 0
        %1407 = vmatprep.subr.bf16.mxu0 0
        %1408 = vmatpush2.bf16.msra.mxu0 0
        %1409 = vmatprep.subr.bf16.mxu0 0
        %1410 = vmatpush2.bf16.msra.mxu0 0
        %1411 = vmatprep.subr.bf16.mxu0 0
        %1412 = vmatpush2.bf16.msra.mxu0 0
        %1413 = vmatprep.mubr.bf16.mxu0 0
        %1414 = vmatmul.mubr.bf16.gmra.mxu0 %v1370
        %v1415 = vpop.f32.mrf.mxu0
        %v1416 = vadd.f32 %v1307, %v1415
        %v1417 = vpop.f32.mrf.mxu0
        %v1418 = vpop.f32.mrf.mxu0
        %v1419 = vadd.f32 %v1310, %v1418
        %v1420 = vpop.f32.mrf.mxu0
        %1421 = vmatprep.mubr.bf16.mxu0 0
        %1422 = vmatmul.mubr.bf16.gmra.mxu0 %v1373
        %v1423 = vpop.f32.mrf.mxu0
        %v1424 = vadd.f32 %v1315, %v1423
        %v1425 = vpop.f32.mrf.mxu0
        %v1426 = vpop.f32.mrf.mxu0
        %v1427 = vadd.f32 %v1318, %v1426
        %v1428 = vpop.f32.mrf.mxu0
        %1429 = vmatprep.mubr.bf16.mxu0 0
        %1430 = vmatmul.mubr.bf16.gmra.mxu0 %v1376
        %v1431 = vpop.f32.mrf.mxu0
        %v1432 = vadd.f32 %v1323, %v1431
        %v1433 = vpop.f32.mrf.mxu0
        %v1434 = vpop.f32.mrf.mxu0
        %v1435 = vadd.f32 %v1326, %v1434
        %v1436 = vpop.f32.mrf.mxu0
        %1437 = vmatprep.mubr.bf16.mxu0 0
        %1438 = vmatmul.mubr.bf16.gmra.mxu0 %v1379
        %v1439 = vpop.f32.mrf.mxu0
        %v1440 = vadd.f32 %v1331, %v1439
        %v1441 = vpop.f32.mrf.mxu0
        %v1442 = vpop.f32.mrf.mxu0
        %v1443 = vadd.f32 %v1334, %v1442
        %v1444 = vpop.f32.mrf.mxu0
        %1445 = vdwg.mxu0
        %v1446 = vld [vmem:[#allocation3] sm:$0xe]
        %v1447 = vld [vmem:[#allocation3 + $0x8] sm:$0xe]
        %v1448 = vld [vmem:[#allocation3 + $0x10] sm:$0xe]
        %v1449 = vld [vmem:[#allocation3 + $0x18] sm:$0xe]
        %v1450 = vld [vmem:[#allocation3 + $0x20] sm:$0xe]
        %v1451 = vld [vmem:[#allocation3 + $0x28] sm:$0xe]
        %v1452 = vld [vmem:[#allocation3 + $0x30] sm:$0xe]
        %v1453 = vld [vmem:[#allocation3 + $0x38] sm:$0xe]
        %vm1470 = vcmask 1042432
        %vm1471 = vcmask 1046532
        %vm1472 = vmor %vm1470, %vm1471
        %v1473 = vrot.slane %v1446, 5
        %v1474 = vrot.slane %v1473, 4
        %v1475 = vrot.slane %v1108, 5
        %v1476 = vsel %vm1472, %v1474, %v1475
        %v1477 = vrot.slane %v1447, 5
        %v1478 = vrot.slane %v1477, 4
        %v1479 = vrot.slane %v1109, 5
        %v1480 = vsel %vm1472, %v1478, %v1479
        %v1481 = vrot.slane %v1448, 5
        %v1482 = vrot.slane %v1481, 4
        %v1483 = vrot.slane %v1110, 5
        %v1484 = vsel %vm1472, %v1482, %v1483
        %v1485 = vrot.slane %v1449, 5
        %v1486 = vrot.slane %v1485, 4
        %v1487 = vrot.slane %v1111, 5
        %v1488 = vsel %vm1472, %v1486, %v1487
        %v1489 = vrot.slane %v1450, 5
        %v1490 = vrot.slane %v1489, 4
        %v1491 = vrot.slane %v1112, 5
        %v1492 = vsel %vm1472, %v1490, %v1491
        %v1493 = vrot.slane %v1451, 5
        %v1494 = vrot.slane %v1493, 4
        %v1495 = vrot.slane %v1113, 5
        %v1496 = vsel %vm1472, %v1494, %v1495
        %v1497 = vrot.slane %v1452, 5
        %v1498 = vrot.slane %v1497, 4
        %v1499 = vrot.slane %v1114, 5
        %v1500 = vsel %vm1472, %v1498, %v1499
        %v1501 = vrot.slane %v1453, 5
        %v1502 = vrot.slane %v1501, 4
        %v1503 = vrot.slane %v1115, 5
        %v1504 = vsel %vm1472, %v1502, %v1503
        %s1505 = scalar_lea.vmem %s4, 32
        %v1506 = vld [vmem:[%s1505] sm:$0xf]
        %v1507 = vld [vmem:[%s1505 + $0x4] sm:$0xf]
        %v1508 = vld [vmem:[%s1505 + $0x8] sm:$0xf]
        %v1509 = vld [vmem:[%s1505 + $0xc] sm:$0xf]
        %v1510 = vunpack.c.l.b16 %v1476
        %v1511 = vunpack.c.l.b16 %v1480
        %v1512 = vunpack.c.l.b16 %v1484
        %v1513 = vunpack.c.l.b16 %v1488
        %v1514 = vunpack.c.l.b16 %v1492
        %v1515 = vunpack.c.l.b16 %v1496
        %v1516 = vunpack.c.l.b16 %v1500
        %v1517 = vunpack.c.l.b16 %v1504
        %v1518 = vpack.c.b16 %v1511, %v1510
        %v1519 = vpack.c.b16 %v1513, %v1512
        %v1520 = vpack.c.b16 %v1515, %v1514
        %v1521 = vpack.c.b16 %v1517, %v1516
        %v1526 = vunpack.c.l.b16 %v1506
        %v1527 = vunpack.c.l.b16 %v1507
        %v1528 = vunpack.c.l.b16 %v1508
        %v1529 = vunpack.c.l.b16 %v1509
        %v1530 = vpack.c.b16 %v1527, %v1526
        %v1531 = vpack.c.b16 %v1529, %v1528
        %v1535 = vsel %vm787, %v1518, 0
        %v1538 = vsel %vm787, %v1519, 0
        %v1541 = vsel %vm787, %v1520, 0
        %v1544 = vsel %vm787, %v1521, 0
        %1546 = vmatprep.subr.bf16.mxu0 0
        %1547 = vmatpush1.bf16.msra.mxu0 0
        %1548 = vmatprep.subr.bf16.mxu0 0
        %1549 = vmatpush1.bf16.msra.mxu0 0
        %1550 = vmatprep.subr.bf16.mxu0 0
        %1551 = vmatpush1.bf16.msra.mxu0 0
        %1552 = vmatprep.subr.bf16.mxu0 0
        %1553 = vmatpush1.bf16.msra.mxu0 0
        %1554 = vmatprep.subr.bf16.mxu0 0
        %1555 = vmatpush1.bf16.msra.mxu0 0
        %1556 = vmatprep.subr.bf16.mxu0 0
        %1557 = vmatpush1.bf16.msra.mxu0 0
        %1558 = vmatprep.subr.bf16.mxu0 0
        %1559 = vmatpush1.bf16.msra.mxu0 %v1531
        %1560 = vmatprep.subr.bf16.mxu0 0
        %1561 = vmatpush1.bf16.msra.mxu0 %v1530
        %1562 = vmatprep.subr.bf16.mxu0 0
        %1563 = vmatpush2.bf16.msra.mxu0 0
        %1564 = vmatprep.subr.bf16.mxu0 0
        %1565 = vmatpush2.bf16.msra.mxu0 0
        %1566 = vmatprep.subr.bf16.mxu0 0
        %1567 = vmatpush2.bf16.msra.mxu0 0
        %1568 = vmatprep.subr.bf16.mxu0 0
        %1569 = vmatpush2.bf16.msra.mxu0 0
        %1570 = vmatprep.subr.bf16.mxu0 0
        %1571 = vmatpush2.bf16.msra.mxu0 0
        %1572 = vmatprep.subr.bf16.mxu0 0
        %1573 = vmatpush2.bf16.msra.mxu0 0
        %1574 = vmatprep.subr.bf16.mxu0 0
        %1575 = vmatpush2.bf16.msra.mxu0 0
        %1576 = vmatprep.subr.bf16.mxu0 0
        %1577 = vmatpush2.bf16.msra.mxu0 0
        %1578 = vmatprep.mubr.bf16.mxu0 0
        %1579 = vmatmul.mubr.bf16.gmra.mxu0 %v1535
        %v1580 = vpop.f32.mrf.mxu0
        %v1581 = vadd.f32 0.0, %v1580
        %v1582 = vpop.f32.mrf.mxu0
        %v1583 = vpop.f32.mrf.mxu0
        %v1584 = vadd.f32 0.0, %v1583
        %v1585 = vpop.f32.mrf.mxu0
        %1586 = vmatprep.mubr.bf16.mxu0 0
        %1587 = vmatmul.mubr.bf16.gmra.mxu0 %v1538
        %v1588 = vpop.f32.mrf.mxu0
        %v1589 = vadd.f32 0.0, %v1588
        %v1590 = vpop.f32.mrf.mxu0
        %v1591 = vpop.f32.mrf.mxu0
        %v1592 = vadd.f32 0.0, %v1591
        %v1593 = vpop.f32.mrf.mxu0
        %1594 = vmatprep.mubr.bf16.mxu0 0
        %1595 = vmatmul.mubr.bf16.gmra.mxu0 %v1541
        %v1596 = vpop.f32.mrf.mxu0
        %v1597 = vadd.f32 0.0, %v1596
        %v1598 = vpop.f32.mrf.mxu0
        %v1599 = vpop.f32.mrf.mxu0
        %v1600 = vadd.f32 0.0, %v1599
        %v1601 = vpop.f32.mrf.mxu0
        %1602 = vmatprep.mubr.bf16.mxu0 0
        %1603 = vmatmul.mubr.bf16.gmra.mxu0 %v1544
        %v1604 = vpop.f32.mrf.mxu0
        %v1605 = vadd.f32 0.0, %v1604
        %v1606 = vpop.f32.mrf.mxu0
        %v1607 = vpop.f32.mrf.mxu0
        %v1608 = vadd.f32 0.0, %v1607
        %v1609 = vpop.f32.mrf.mxu0
        %1610 = vdwg.mxu0
        %v1611 = vadd.f32 %v1416, %v1581
        %v1612 = vadd.f32 %v1419, %v1584
        %v1613 = vadd.f32 %v1424, %v1589
        %v1614 = vadd.f32 %v1427, %v1592
        %v1615 = vadd.f32 %v1432, %v1597
        %v1616 = vadd.f32 %v1435, %v1600
        %v1617 = vadd.f32 %v1440, %v1605
        %v1618 = vadd.f32 %v1443, %v1608
        %v1619 = vld [vmem:[%s1041] sm:$0xf]
        %v1620 = vld [vmem:[%s1041 + $0x8] sm:$0xf]
        %v1621 = vld [vmem:[%s1041 + $0x10] sm:$0xf]
        %v1622 = vld [vmem:[%s1041 + $0x18] sm:$0xf]
        %v1623 = vld [vmem:[%s1041 + $0x20] sm:$0xf]
        %v1624 = vld [vmem:[%s1041 + $0x28] sm:$0xf]
        %v1625 = vld [vmem:[%s1041 + $0x30] sm:$0xf]
        %v1626 = vld [vmem:[%s1041 + $0x38] sm:$0xf]
        %s1627 = scalar_lea.vmem %s4, 48
        %v1628 = vld [vmem:[%s1627] sm:$0xf]
        %v1629 = vld [vmem:[%s1627 + $0x4] sm:$0xf]
        %v1630 = vld [vmem:[%s1627 + $0x8] sm:$0xf]
        %v1631 = vld [vmem:[%s1627 + $0xc] sm:$0xf]
        %v1640 = vunpack.c.l.b16 %v1619
        %v1641 = vunpack.c.l.b16 %v1620
        %v1642 = vunpack.c.l.b16 %v1621
        %v1643 = vunpack.c.l.b16 %v1622
        %v1644 = vunpack.c.l.b16 %v1623
        %v1645 = vunpack.c.l.b16 %v1624
        %v1646 = vunpack.c.l.b16 %v1625
        %v1647 = vunpack.c.l.b16 %v1626
        %v1648 = vpack.c.b16 %v1641, %v1640
        %v1649 = vpack.c.b16 %v1643, %v1642
        %v1650 = vpack.c.b16 %v1645, %v1644
        %v1651 = vpack.c.b16 %v1647, %v1646
        %v1656 = vunpack.c.l.b16 %v1628
        %v1657 = vunpack.c.l.b16 %v1629
        %v1658 = vunpack.c.l.b16 %v1630
        %v1659 = vunpack.c.l.b16 %v1631
        %v1660 = vpack.c.b16 %v1657, %v1656
        %v1661 = vpack.c.b16 %v1659, %v1658
        %v1665 = vsel %vm787, %v1648, 0
        %v1668 = vsel %vm787, %v1649, 0
        %v1671 = vsel %vm787, %v1650, 0
        %v1674 = vsel %vm787, %v1651, 0
        %1676 = vmatprep.subr.bf16.mxu0 0
        %1677 = vmatpush1.bf16.msra.mxu0 0
        %1678 = vmatprep.subr.bf16.mxu0 0
        %1679 = vmatpush1.bf16.msra.mxu0 0
        %1680 = vmatprep.subr.bf16.mxu0 0
        %1681 = vmatpush1.bf16.msra.mxu0 0
        %1682 = vmatprep.subr.bf16.mxu0 0
        %1683 = vmatpush1.bf16.msra.mxu0 0
        %1684 = vmatprep.subr.bf16.mxu0 0
        %1685 = vmatpush1.bf16.msra.mxu0 0
        %1686 = vmatprep.subr.bf16.mxu0 0
        %1687 = vmatpush1.bf16.msra.mxu0 0
        %1688 = vmatprep.subr.bf16.mxu0 0
        %1689 = vmatpush1.bf16.msra.mxu0 %v1661
        %1690 = vmatprep.subr.bf16.mxu0 0
        %1691 = vmatpush1.bf16.msra.mxu0 %v1660
        %1692 = vmatprep.subr.bf16.mxu0 0
        %1693 = vmatpush2.bf16.msra.mxu0 0
        %1694 = vmatprep.subr.bf16.mxu0 0
        %1695 = vmatpush2.bf16.msra.mxu0 0
        %1696 = vmatprep.subr.bf16.mxu0 0
        %1697 = vmatpush2.bf16.msra.mxu0 0
        %1698 = vmatprep.subr.bf16.mxu0 0
        %1699 = vmatpush2.bf16.msra.mxu0 0
        %1700 = vmatprep.subr.bf16.mxu0 0
        %1701 = vmatpush2.bf16.msra.mxu0 0
        %1702 = vmatprep.subr.bf16.mxu0 0
        %1703 = vmatpush2.bf16.msra.mxu0 0
        %1704 = vmatprep.subr.bf16.mxu0 0
        %1705 = vmatpush2.bf16.msra.mxu0 0
        %1706 = vmatprep.subr.bf16.mxu0 0
        %1707 = vmatpush2.bf16.msra.mxu0 0
        %1708 = vmatprep.mubr.bf16.mxu0 0
        %1709 = vmatmul.mubr.bf16.gmra.mxu0 %v1665
        %v1710 = vpop.f32.mrf.mxu0
        %v1711 = vadd.f32 0.0, %v1710
        %v1712 = vpop.f32.mrf.mxu0
        %v1713 = vpop.f32.mrf.mxu0
        %v1714 = vadd.f32 0.0, %v1713
        %v1715 = vpop.f32.mrf.mxu0
        %1716 = vmatprep.mubr.bf16.mxu0 0
        %1717 = vmatmul.mubr.bf16.gmra.mxu0 %v1668
        %v1718 = vpop.f32.mrf.mxu0
        %v1719 = vadd.f32 0.0, %v1718
        %v1720 = vpop.f32.mrf.mxu0
        %v1721 = vpop.f32.mrf.mxu0
        %v1722 = vadd.f32 0.0, %v1721
        %v1723 = vpop.f32.mrf.mxu0
        %1724 = vmatprep.mubr.bf16.mxu0 0
        %1725 = vmatmul.mubr.bf16.gmra.mxu0 %v1671
        %v1726 = vpop.f32.mrf.mxu0
        %v1727 = vadd.f32 0.0, %v1726
        %v1728 = vpop.f32.mrf.mxu0
        %v1729 = vpop.f32.mrf.mxu0
        %v1730 = vadd.f32 0.0, %v1729
        %v1731 = vpop.f32.mrf.mxu0
        %1732 = vmatprep.mubr.bf16.mxu0 0
        %1733 = vmatmul.mubr.bf16.gmra.mxu0 %v1674
        %v1734 = vpop.f32.mrf.mxu0
        %v1735 = vadd.f32 0.0, %v1734
        %v1736 = vpop.f32.mrf.mxu0
        %v1737 = vpop.f32.mrf.mxu0
        %v1738 = vadd.f32 0.0, %v1737
        %v1739 = vpop.f32.mrf.mxu0
        %1740 = vdwg.mxu0
        %v1741 = vadd.f32 %v1611, %v1711
        %v1742 = vadd.f32 %v1612, %v1714
        %v1743 = vadd.f32 %v1613, %v1719
        %v1744 = vadd.f32 %v1614, %v1722
        %v1745 = vadd.f32 %v1615, %v1727
        %v1746 = vadd.f32 %v1616, %v1730
        %v1747 = vadd.f32 %v1617, %v1735
        %v1748 = vadd.f32 %v1618, %v1738
        %v1749 = vld [vmem:[%s1041] sm:$0xf]
        %v1750 = vld [vmem:[%s1041 + $0x4] sm:$0x1]
        %v1751 = vld [vmem:[%s1041 + $0x8] sm:$0xf]
        %v1752 = vld [vmem:[%s1041 + $0xc] sm:$0x1]
        %v1753 = vld [vmem:[%s1041 + $0x10] sm:$0xf]
        %v1754 = vld [vmem:[%s1041 + $0x14] sm:$0x1]
        %v1755 = vld [vmem:[%s1041 + $0x18] sm:$0xf]
        %v1756 = vld [vmem:[%s1041 + $0x1c] sm:$0x1]
        %v1757 = vld [vmem:[%s1041 + $0x20] sm:$0xf]
        %v1758 = vld [vmem:[%s1041 + $0x24] sm:$0x1]
        %v1759 = vld [vmem:[%s1041 + $0x28] sm:$0xf]
        %v1760 = vld [vmem:[%s1041 + $0x2c] sm:$0x1]
        %v1761 = vld [vmem:[%s1041 + $0x30] sm:$0xf]
        %v1762 = vld [vmem:[%s1041 + $0x34] sm:$0x1]
        %v1763 = vld [vmem:[%s1041 + $0x38] sm:$0xf]
        %v1764 = vld [vmem:[%s1041 + $0x3c] sm:$0x1]
        %v1766 = vshrl.u32 %v1749, 16
        %v1768 = vrot.slane %v1766, 4
        %v1769 = vshll.u32 %v1749, 16
        %v1771 = vrot.slane %v1769, 5
        %v1772 = vor.u32 %v1768, %v1771
        %v1773 = vrot.slane %v1772, 4
        %v1775 = vshll.u32 %v1750, 16
        %v1777 = vrot.slane %v1775, 5
        %v1778 = vsel %vm1118, %v1773, %v1777
        %v1780 = vshrl.u32 %v1751, 16
        %v1782 = vrot.slane %v1780, 4
        %v1783 = vshll.u32 %v1751, 16
        %v1785 = vrot.slane %v1783, 5
        %v1786 = vor.u32 %v1782, %v1785
        %v1787 = vrot.slane %v1786, 4
        %v1789 = vshll.u32 %v1752, 16
        %v1791 = vrot.slane %v1789, 5
        %v1792 = vsel %vm1118, %v1787, %v1791
        %v1794 = vshrl.u32 %v1753, 16
        %v1796 = vrot.slane %v1794, 4
        %v1797 = vshll.u32 %v1753, 16
        %v1799 = vrot.slane %v1797, 5
        %v1800 = vor.u32 %v1796, %v1799
        %v1801 = vrot.slane %v1800, 4
        %v1803 = vshll.u32 %v1754, 16
        %v1805 = vrot.slane %v1803, 5
        %v1806 = vsel %vm1118, %v1801, %v1805
        %v1808 = vshrl.u32 %v1755, 16
        %v1810 = vrot.slane %v1808, 4
        %v1811 = vshll.u32 %v1755, 16
        %v1813 = vrot.slane %v1811, 5
        %v1814 = vor.u32 %v1810, %v1813
        %v1815 = vrot.slane %v1814, 4
        %v1817 = vshll.u32 %v1756, 16
        %v1819 = vrot.slane %v1817, 5
        %v1820 = vsel %vm1118, %v1815, %v1819
        %v1822 = vshrl.u32 %v1757, 16
        %v1824 = vrot.slane %v1822, 4
        %v1825 = vshll.u32 %v1757, 16
        %v1827 = vrot.slane %v1825, 5
        %v1828 = vor.u32 %v1824, %v1827
        %v1829 = vrot.slane %v1828, 4
        %v1831 = vshll.u32 %v1758, 16
        %v1833 = vrot.slane %v1831, 5
        %v1834 = vsel %vm1118, %v1829, %v1833
        %v1836 = vshrl.u32 %v1759, 16
        %v1838 = vrot.slane %v1836, 4
        %v1839 = vshll.u32 %v1759, 16
        %v1841 = vrot.slane %v1839, 5
        %v1842 = vor.u32 %v1838, %v1841
        %v1843 = vrot.slane %v1842, 4
        %v1845 = vshll.u32 %v1760, 16
        %v1847 = vrot.slane %v1845, 5
        %v1848 = vsel %vm1118, %v1843, %v1847
        %v1850 = vshrl.u32 %v1761, 16
        %v1852 = vrot.slane %v1850, 4
        %v1853 = vshll.u32 %v1761, 16
        %v1855 = vrot.slane %v1853, 5
        %v1856 = vor.u32 %v1852, %v1855
        %v1857 = vrot.slane %v1856, 4
        %v1859 = vshll.u32 %v1762, 16
        %v1861 = vrot.slane %v1859, 5
        %v1862 = vsel %vm1118, %v1857, %v1861
        %v1864 = vshrl.u32 %v1763, 16
        %v1866 = vrot.slane %v1864, 4
        %v1867 = vshll.u32 %v1763, 16
        %v1869 = vrot.slane %v1867, 5
        %v1870 = vor.u32 %v1866, %v1869
        %v1871 = vrot.slane %v1870, 4
        %v1873 = vshll.u32 %v1764, 16
        %v1875 = vrot.slane %v1873, 5
        %v1876 = vsel %vm1118, %v1871, %v1875
        %s1877 = scalar_lea.vmem %s4, 64
        %v1878 = vld [vmem:[%s1877] sm:$0xf]
        %v1879 = vld [vmem:[%s1877 + $0x4] sm:$0xf]
        %v1880 = vld [vmem:[%s1877 + $0x8] sm:$0xf]
        %v1881 = vld [vmem:[%s1877 + $0xc] sm:$0xf]
        %v1882 = vunpack.c.l.b16 %v1778
        %v1883 = vunpack.c.l.b16 %v1792
        %v1884 = vunpack.c.l.b16 %v1806
        %v1885 = vunpack.c.l.b16 %v1820
        %v1886 = vunpack.c.l.b16 %v1834
        %v1887 = vunpack.c.l.b16 %v1848
        %v1888 = vunpack.c.l.b16 %v1862
        %v1889 = vunpack.c.l.b16 %v1876
        %v1890 = vpack.c.b16 %v1883, %v1882
        %v1891 = vpack.c.b16 %v1885, %v1884
        %v1892 = vpack.c.b16 %v1887, %v1886
        %v1893 = vpack.c.b16 %v1889, %v1888
        %v1898 = vunpack.c.l.b16 %v1878
        %v1899 = vunpack.c.l.b16 %v1879
        %v1900 = vunpack.c.l.b16 %v1880
        %v1901 = vunpack.c.l.b16 %v1881
        %v1902 = vpack.c.b16 %v1899, %v1898
        %v1903 = vpack.c.b16 %v1901, %v1900
        %v1907 = vsel %vm787, %v1890, 0
        %v1910 = vsel %vm787, %v1891, 0
        %v1913 = vsel %vm787, %v1892, 0
        %v1916 = vsel %vm787, %v1893, 0
        %1918 = vmatprep.subr.bf16.mxu0 0
        %1919 = vmatpush1.bf16.msra.mxu0 0
        %1920 = vmatprep.subr.bf16.mxu0 0
        %1921 = vmatpush1.bf16.msra.mxu0 0
        %1922 = vmatprep.subr.bf16.mxu0 0
        %1923 = vmatpush1.bf16.msra.mxu0 0
        %1924 = vmatprep.subr.bf16.mxu0 0
        %1925 = vmatpush1.bf16.msra.mxu0 0
        %1926 = vmatprep.subr.bf16.mxu0 0
        %1927 = vmatpush1.bf16.msra.mxu0 0
        %1928 = vmatprep.subr.bf16.mxu0 0
        %1929 = vmatpush1.bf16.msra.mxu0 0
        %1930 = vmatprep.subr.bf16.mxu0 0
        %1931 = vmatpush1.bf16.msra.mxu0 %v1903
        %1932 = vmatprep.subr.bf16.mxu0 0
        %1933 = vmatpush1.bf16.msra.mxu0 %v1902
        %1934 = vmatprep.subr.bf16.mxu0 0
        %1935 = vmatpush2.bf16.msra.mxu0 0
        %1936 = vmatprep.subr.bf16.mxu0 0
        %1937 = vmatpush2.bf16.msra.mxu0 0
        %1938 = vmatprep.subr.bf16.mxu0 0
        %1939 = vmatpush2.bf16.msra.mxu0 0
        %1940 = vmatprep.subr.bf16.mxu0 0
        %1941 = vmatpush2.bf16.msra.mxu0 0
        %1942 = vmatprep.subr.bf16.mxu0 0
        %1943 = vmatpush2.bf16.msra.mxu0 0
        %1944 = vmatprep.subr.bf16.mxu0 0
        %1945 = vmatpush2.bf16.msra.mxu0 0
        %1946 = vmatprep.subr.bf16.mxu0 0
        %1947 = vmatpush2.bf16.msra.mxu0 0
        %1948 = vmatprep.subr.bf16.mxu0 0
        %1949 = vmatpush2.bf16.msra.mxu0 0
        %1950 = vmatprep.mubr.bf16.mxu0 0
        %1951 = vmatmul.mubr.bf16.gmra.mxu0 %v1907
        %v1952 = vpop.f32.mrf.mxu0
        %v1953 = vadd.f32 0.0, %v1952
        %v1954 = vpop.f32.mrf.mxu0
        %v1955 = vpop.f32.mrf.mxu0
        %v1956 = vadd.f32 0.0, %v1955
        %v1957 = vpop.f32.mrf.mxu0
        %1958 = vmatprep.mubr.bf16.mxu0 0
        %1959 = vmatmul.mubr.bf16.gmra.mxu0 %v1910
        %v1960 = vpop.f32.mrf.mxu0
        %v1961 = vadd.f32 0.0, %v1960
        %v1962 = vpop.f32.mrf.mxu0
        %v1963 = vpop.f32.mrf.mxu0
        %v1964 = vadd.f32 0.0, %v1963
        %v1965 = vpop.f32.mrf.mxu0
        %1966 = vmatprep.mubr.bf16.mxu0 0
        %1967 = vmatmul.mubr.bf16.gmra.mxu0 %v1913
        %v1968 = vpop.f32.mrf.mxu0
        %v1969 = vadd.f32 0.0, %v1968
        %v1970 = vpop.f32.mrf.mxu0
        %v1971 = vpop.f32.mrf.mxu0
        %v1972 = vadd.f32 0.0, %v1971
        %v1973 = vpop.f32.mrf.mxu0
        %1974 = vmatprep.mubr.bf16.mxu0 0
        %1975 = vmatmul.mubr.bf16.gmra.mxu0 %v1916
        %v1976 = vpop.f32.mrf.mxu0
        %v1977 = vadd.f32 0.0, %v1976
        %v1978 = vpop.f32.mrf.mxu0
        %v1979 = vpop.f32.mrf.mxu0
        %v1980 = vadd.f32 0.0, %v1979
        %v1981 = vpop.f32.mrf.mxu0
        %1982 = vdwg.mxu0
        %v1983 = vadd.f32 %v1741, %v1953
        %v1984 = vadd.f32 %v1742, %v1956
        %v1985 = vadd.f32 %v1743, %v1961
        %v1986 = vadd.f32 %v1744, %v1964
        %v1987 = vadd.f32 %v1745, %v1969
        %v1988 = vadd.f32 %v1746, %v1972
        %v1989 = vadd.f32 %v1747, %v1977
        %v1990 = vadd.f32 %v1748, %v1980
        %v1991 = vld [vmem:[%s1041] sm:$0xe]
        %v1992 = vld [vmem:[%s1041 + $0x8] sm:$0xe]
        %v1993 = vld [vmem:[%s1041 + $0x10] sm:$0xe]
        %v1994 = vld [vmem:[%s1041 + $0x18] sm:$0xe]
        %v1995 = vld [vmem:[%s1041 + $0x20] sm:$0xe]
        %v1996 = vld [vmem:[%s1041 + $0x28] sm:$0xe]
        %v1997 = vld [vmem:[%s1041 + $0x30] sm:$0xe]
        %v1998 = vld [vmem:[%s1041 + $0x38] sm:$0xe]
        %v2015 = vrot.slane %v1991, 5
        %v2016 = vrot.slane %v2015, 4
        %v2017 = vrot.slane %v1750, 5
        %v2018 = vsel %vm1472, %v2016, %v2017
        %v2019 = vrot.slane %v1992, 5
        %v2020 = vrot.slane %v2019, 4
        %v2021 = vrot.slane %v1752, 5
        %v2022 = vsel %vm1472, %v2020, %v2021
        %v2023 = vrot.slane %v1993, 5
        %v2024 = vrot.slane %v2023, 4
        %v2025 = vrot.slane %v1754, 5
        %v2026 = vsel %vm1472, %v2024, %v2025
        %v2027 = vrot.slane %v1994, 5
        %v2028 = vrot.slane %v2027, 4
        %v2029 = vrot.slane %v1756, 5
        %v2030 = vsel %vm1472, %v2028, %v2029
        %v2031 = vrot.slane %v1995, 5
        %v2032 = vrot.slane %v2031, 4
        %v2033 = vrot.slane %v1758, 5
        %v2034 = vsel %vm1472, %v2032, %v2033
        %v2035 = vrot.slane %v1996, 5
        %v2036 = vrot.slane %v2035, 4
        %v2037 = vrot.slane %v1760, 5
        %v2038 = vsel %vm1472, %v2036, %v2037
        %v2039 = vrot.slane %v1997, 5
        %v2040 = vrot.slane %v2039, 4
        %v2041 = vrot.slane %v1762, 5
        %v2042 = vsel %vm1472, %v2040, %v2041
        %v2043 = vrot.slane %v1998, 5
        %v2044 = vrot.slane %v2043, 4
        %v2045 = vrot.slane %v1764, 5
        %v2046 = vsel %vm1472, %v2044, %v2045
        %s2047 = scalar_lea.vmem %s4, 80
        %v2048 = vld [vmem:[%s2047] sm:$0xf]
        %v2049 = vld [vmem:[%s2047 + $0x4] sm:$0xf]
        %v2050 = vld [vmem:[%s2047 + $0x8] sm:$0xf]
        %v2051 = vld [vmem:[%s2047 + $0xc] sm:$0xf]
        %v2052 = vunpack.c.l.b16 %v2018
        %v2053 = vunpack.c.l.b16 %v2022
        %v2054 = vunpack.c.l.b16 %v2026
        %v2055 = vunpack.c.l.b16 %v2030
        %v2056 = vunpack.c.l.b16 %v2034
        %v2057 = vunpack.c.l.b16 %v2038
        %v2058 = vunpack.c.l.b16 %v2042
        %v2059 = vunpack.c.l.b16 %v2046
        %v2060 = vpack.c.b16 %v2053, %v2052
        %v2061 = vpack.c.b16 %v2055, %v2054
        %v2062 = vpack.c.b16 %v2057, %v2056
        %v2063 = vpack.c.b16 %v2059, %v2058
        %v2068 = vunpack.c.l.b16 %v2048
        %v2069 = vunpack.c.l.b16 %v2049
        %v2070 = vunpack.c.l.b16 %v2050
        %v2071 = vunpack.c.l.b16 %v2051
        %v2072 = vpack.c.b16 %v2069, %v2068
        %v2073 = vpack.c.b16 %v2071, %v2070
        %v2077 = vsel %vm787, %v2060, 0
        %v2080 = vsel %vm787, %v2061, 0
        %v2083 = vsel %vm787, %v2062, 0
        %v2086 = vsel %vm787, %v2063, 0
        %2088 = vmatprep.subr.bf16.mxu0 0
        %2089 = vmatpush1.bf16.msra.mxu0 0
        %2090 = vmatprep.subr.bf16.mxu0 0
        %2091 = vmatpush1.bf16.msra.mxu0 0
        %2092 = vmatprep.subr.bf16.mxu0 0
        %2093 = vmatpush1.bf16.msra.mxu0 0
        %2094 = vmatprep.subr.bf16.mxu0 0
        %2095 = vmatpush1.bf16.msra.mxu0 0
        %2096 = vmatprep.subr.bf16.mxu0 0
        %2097 = vmatpush1.bf16.msra.mxu0 0
        %2098 = vmatprep.subr.bf16.mxu0 0
        %2099 = vmatpush1.bf16.msra.mxu0 0
        %2100 = vmatprep.subr.bf16.mxu0 0
        %2101 = vmatpush1.bf16.msra.mxu0 %v2073
        %2102 = vmatprep.subr.bf16.mxu0 0
        %2103 = vmatpush1.bf16.msra.mxu0 %v2072
        %2104 = vmatprep.subr.bf16.mxu0 0
        %2105 = vmatpush2.bf16.msra.mxu0 0
        %2106 = vmatprep.subr.bf16.mxu0 0
        %2107 = vmatpush2.bf16.msra.mxu0 0
        %2108 = vmatprep.subr.bf16.mxu0 0
        %2109 = vmatpush2.bf16.msra.mxu0 0
        %2110 = vmatprep.subr.bf16.mxu0 0
        %2111 = vmatpush2.bf16.msra.mxu0 0
        %2112 = vmatprep.subr.bf16.mxu0 0
        %2113 = vmatpush2.bf16.msra.mxu0 0
        %2114 = vmatprep.subr.bf16.mxu0 0
        %2115 = vmatpush2.bf16.msra.mxu0 0
        %2116 = vmatprep.subr.bf16.mxu0 0
        %2117 = vmatpush2.bf16.msra.mxu0 0
        %2118 = vmatprep.subr.bf16.mxu0 0
        %2119 = vmatpush2.bf16.msra.mxu0 0
        %2120 = vmatprep.mubr.bf16.mxu0 0
        %2121 = vmatmul.mubr.bf16.gmra.mxu0 %v2077
        %v2122 = vpop.f32.mrf.mxu0
        %v2123 = vadd.f32 0.0, %v2122
        %v2124 = vpop.f32.mrf.mxu0
        %v2125 = vpop.f32.mrf.mxu0
        %v2126 = vadd.f32 0.0, %v2125
        %v2127 = vpop.f32.mrf.mxu0
        %2128 = vmatprep.mubr.bf16.mxu0 0
        %2129 = vmatmul.mubr.bf16.gmra.mxu0 %v2080
        %v2130 = vpop.f32.mrf.mxu0
        %v2131 = vadd.f32 0.0, %v2130
        %v2132 = vpop.f32.mrf.mxu0
        %v2133 = vpop.f32.mrf.mxu0
        %v2134 = vadd.f32 0.0, %v2133
        %v2135 = vpop.f32.mrf.mxu0
        %2136 = vmatprep.mubr.bf16.mxu0 0
        %2137 = vmatmul.mubr.bf16.gmra.mxu0 %v2083
        %v2138 = vpop.f32.mrf.mxu0
        %v2139 = vadd.f32 0.0, %v2138
        %v2140 = vpop.f32.mrf.mxu0
        %v2141 = vpop.f32.mrf.mxu0
        %v2142 = vadd.f32 0.0, %v2141
        %v2143 = vpop.f32.mrf.mxu0
        %2144 = vmatprep.mubr.bf16.mxu0 0
        %2145 = vmatmul.mubr.bf16.gmra.mxu0 %v2086
        %v2146 = vpop.f32.mrf.mxu0
        %v2147 = vadd.f32 0.0, %v2146
        %v2148 = vpop.f32.mrf.mxu0
        %v2149 = vpop.f32.mrf.mxu0
        %v2150 = vadd.f32 0.0, %v2149
        %v2151 = vpop.f32.mrf.mxu0
        %2152 = vdwg.mxu0
        %v2153 = vadd.f32 %v1983, %v2123
        %v2154 = vadd.f32 %v1984, %v2126
        %v2155 = vadd.f32 %v1985, %v2131
        %v2156 = vadd.f32 %v1986, %v2134
        %v2157 = vadd.f32 %v1987, %v2139
        %v2158 = vadd.f32 %v1988, %v2142
        %v2159 = vadd.f32 %v1989, %v2147
        %v2160 = vadd.f32 %v1990, %v2150
        %s2161 = scalar_lea.vmem [#allocation3], 16
        %v2162 = vld [vmem:[%s2161] sm:$0xf]
        %v2163 = vld [vmem:[%s2161 + $0x8] sm:$0xf]
        %v2164 = vld [vmem:[%s2161 + $0x10] sm:$0xf]
        %v2165 = vld [vmem:[%s2161 + $0x18] sm:$0xf]
        %v2166 = vld [vmem:[%s2161 + $0x20] sm:$0xf]
        %v2167 = vld [vmem:[%s2161 + $0x28] sm:$0xf]
        %v2168 = vld [vmem:[%s2161 + $0x30] sm:$0xf]
        %v2169 = vld [vmem:[%s2161 + $0x38] sm:$0xf]
        %s2170 = scalar_lea.vmem %s4, 96
        %v2171 = vld [vmem:[%s2170] sm:$0xf]
        %v2172 = vld [vmem:[%s2170 + $0x4] sm:$0xf]
        %v2173 = vld [vmem:[%s2170 + $0x8] sm:$0xf]
        %v2174 = vld [vmem:[%s2170 + $0xc] sm:$0xf]
        %v2183 = vunpack.c.l.b16 %v2162
        %v2184 = vunpack.c.l.b16 %v2163
        %v2185 = vunpack.c.l.b16 %v2164
        %v2186 = vunpack.c.l.b16 %v2165
        %v2187 = vunpack.c.l.b16 %v2166
        %v2188 = vunpack.c.l.b16 %v2167
        %v2189 = vunpack.c.l.b16 %v2168
        %v2190 = vunpack.c.l.b16 %v2169
        %v2191 = vpack.c.b16 %v2184, %v2183
        %v2192 = vpack.c.b16 %v2186, %v2185
        %v2193 = vpack.c.b16 %v2188, %v2187
        %v2194 = vpack.c.b16 %v2190, %v2189
        %v2199 = vunpack.c.l.b16 %v2171
        %v2200 = vunpack.c.l.b16 %v2172
        %v2201 = vunpack.c.l.b16 %v2173
        %v2202 = vunpack.c.l.b16 %v2174
        %v2203 = vpack.c.b16 %v2200, %v2199
        %v2204 = vpack.c.b16 %v2202, %v2201
        %v2208 = vsel %vm787, %v2191, 0
        %v2211 = vsel %vm787, %v2192, 0
        %v2214 = vsel %vm787, %v2193, 0
        %v2217 = vsel %vm787, %v2194, 0
        %2219 = vmatprep.subr.bf16.mxu0 0
        %2220 = vmatpush1.bf16.msra.mxu0 0
        %2221 = vmatprep.subr.bf16.mxu0 0
        %2222 = vmatpush1.bf16.msra.mxu0 0
        %2223 = vmatprep.subr.bf16.mxu0 0
        %2224 = vmatpush1.bf16.msra.mxu0 0
        %2225 = vmatprep.subr.bf16.mxu0 0
        %2226 = vmatpush1.bf16.msra.mxu0 0
        %2227 = vmatprep.subr.bf16.mxu0 0
        %2228 = vmatpush1.bf16.msra.mxu0 0
        %2229 = vmatprep.subr.bf16.mxu0 0
        %2230 = vmatpush1.bf16.msra.mxu0 0
        %2231 = vmatprep.subr.bf16.mxu0 0
        %2232 = vmatpush1.bf16.msra.mxu0 %v2204
        %2233 = vmatprep.subr.bf16.mxu0 0
        %2234 = vmatpush1.bf16.msra.mxu0 %v2203
        %2235 = vmatprep.subr.bf16.mxu0 0
        %2236 = vmatpush2.bf16.msra.mxu0 0
        %2237 = vmatprep.subr.bf16.mxu0 0
        %2238 = vmatpush2.bf16.msra.mxu0 0
        %2239 = vmatprep.subr.bf16.mxu0 0
        %2240 = vmatpush2.bf16.msra.mxu0 0
        %2241 = vmatprep.subr.bf16.mxu0 0
        %2242 = vmatpush2.bf16.msra.mxu0 0
        %2243 = vmatprep.subr.bf16.mxu0 0
        %2244 = vmatpush2.bf16.msra.mxu0 0
        %2245 = vmatprep.subr.bf16.mxu0 0
        %2246 = vmatpush2.bf16.msra.mxu0 0
        %2247 = vmatprep.subr.bf16.mxu0 0
        %2248 = vmatpush2.bf16.msra.mxu0 0
        %2249 = vmatprep.subr.bf16.mxu0 0
        %2250 = vmatpush2.bf16.msra.mxu0 0
        %2251 = vmatprep.mubr.bf16.mxu0 0
        %2252 = vmatmul.mubr.bf16.gmra.mxu0 %v2208
        %v2253 = vpop.f32.mrf.mxu0
        %v2254 = vadd.f32 0.0, %v2253
        %v2255 = vpop.f32.mrf.mxu0
        %v2256 = vpop.f32.mrf.mxu0
        %v2257 = vadd.f32 0.0, %v2256
        %v2258 = vpop.f32.mrf.mxu0
        %2259 = vmatprep.mubr.bf16.mxu0 0
        %2260 = vmatmul.mubr.bf16.gmra.mxu0 %v2211
        %v2261 = vpop.f32.mrf.mxu0
        %v2262 = vadd.f32 0.0, %v2261
        %v2263 = vpop.f32.mrf.mxu0
        %v2264 = vpop.f32.mrf.mxu0
        %v2265 = vadd.f32 0.0, %v2264
        %v2266 = vpop.f32.mrf.mxu0
        %2267 = vmatprep.mubr.bf16.mxu0 0
        %2268 = vmatmul.mubr.bf16.gmra.mxu0 %v2214
        %v2269 = vpop.f32.mrf.mxu0
        %v2270 = vadd.f32 0.0, %v2269
        %v2271 = vpop.f32.mrf.mxu0
        %v2272 = vpop.f32.mrf.mxu0
        %v2273 = vadd.f32 0.0, %v2272
        %v2274 = vpop.f32.mrf.mxu0
        %2275 = vmatprep.mubr.bf16.mxu0 0
        %2276 = vmatmul.mubr.bf16.gmra.mxu0 %v2217
        %v2277 = vpop.f32.mrf.mxu0
        %v2278 = vadd.f32 0.0, %v2277
        %v2279 = vpop.f32.mrf.mxu0
        %v2280 = vpop.f32.mrf.mxu0
        %v2281 = vadd.f32 0.0, %v2280
        %v2282 = vpop.f32.mrf.mxu0
        %2283 = vdwg.mxu0
        %v2284 = vadd.f32 %v2153, %v2254
        %v2285 = vadd.f32 %v2154, %v2257
        %v2286 = vadd.f32 %v2155, %v2262
        %v2287 = vadd.f32 %v2156, %v2265
        %v2288 = vadd.f32 %v2157, %v2270
        %v2289 = vadd.f32 %v2158, %v2273
        %v2290 = vadd.f32 %v2159, %v2278
        %v2291 = vadd.f32 %v2160, %v2281
        %v2292 = vld [vmem:[%s2161] sm:$0xf]
        %v2293 = vld [vmem:[%s2161 + $0x4] sm:$0x1]
        %v2294 = vld [vmem:[%s2161 + $0x8] sm:$0xf]
        %v2295 = vld [vmem:[%s2161 + $0xc] sm:$0x1]
        %v2296 = vld [vmem:[%s2161 + $0x10] sm:$0xf]
        %v2297 = vld [vmem:[%s2161 + $0x14] sm:$0x1]
        %v2298 = vld [vmem:[%s2161 + $0x18] sm:$0xf]
        %v2299 = vld [vmem:[%s2161 + $0x1c] sm:$0x1]
        %v2300 = vld [vmem:[%s2161 + $0x20] sm:$0xf]
        %v2301 = vld [vmem:[%s2161 + $0x24] sm:$0x1]
        %v2302 = vld [vmem:[%s2161 + $0x28] sm:$0xf]
        %v2303 = vld [vmem:[%s2161 + $0x2c] sm:$0x1]
        %v2304 = vld [vmem:[%s2161 + $0x30] sm:$0xf]
        %v2305 = vld [vmem:[%s2161 + $0x34] sm:$0x1]
        %v2306 = vld [vmem:[%s2161 + $0x38] sm:$0xf]
        %v2307 = vld [vmem:[%s2161 + $0x3c] sm:$0x1]
        %v2309 = vshrl.u32 %v2292, 16
        %v2311 = vrot.slane %v2309, 4
        %v2312 = vshll.u32 %v2292, 16
        %v2314 = vrot.slane %v2312, 5
        %v2315 = vor.u32 %v2311, %v2314
        %v2316 = vrot.slane %v2315, 4
        %v2318 = vshll.u32 %v2293, 16
        %v2320 = vrot.slane %v2318, 5
        %v2321 = vsel %vm1118, %v2316, %v2320
        %v2323 = vshrl.u32 %v2294, 16
        %v2325 = vrot.slane %v2323, 4
        %v2326 = vshll.u32 %v2294, 16
        %v2328 = vrot.slane %v2326, 5
        %v2329 = vor.u32 %v2325, %v2328
        %v2330 = vrot.slane %v2329, 4
        %v2332 = vshll.u32 %v2295, 16
        %v2334 = vrot.slane %v2332, 5
        %v2335 = vsel %vm1118, %v2330, %v2334
        %v2337 = vshrl.u32 %v2296, 16
        %v2339 = vrot.slane %v2337, 4
        %v2340 = vshll.u32 %v2296, 16
        %v2342 = vrot.slane %v2340, 5
        %v2343 = vor.u32 %v2339, %v2342
        %v2344 = vrot.slane %v2343, 4
        %v2346 = vshll.u32 %v2297, 16
        %v2348 = vrot.slane %v2346, 5
        %v2349 = vsel %vm1118, %v2344, %v2348
        %v2351 = vshrl.u32 %v2298, 16
        %v2353 = vrot.slane %v2351, 4
        %v2354 = vshll.u32 %v2298, 16
        %v2356 = vrot.slane %v2354, 5
        %v2357 = vor.u32 %v2353, %v2356
        %v2358 = vrot.slane %v2357, 4
        %v2360 = vshll.u32 %v2299, 16
        %v2362 = vrot.slane %v2360, 5
        %v2363 = vsel %vm1118, %v2358, %v2362
        %v2365 = vshrl.u32 %v2300, 16
        %v2367 = vrot.slane %v2365, 4
        %v2368 = vshll.u32 %v2300, 16
        %v2370 = vrot.slane %v2368, 5
        %v2371 = vor.u32 %v2367, %v2370
        %v2372 = vrot.slane %v2371, 4
        %v2374 = vshll.u32 %v2301, 16
        %v2376 = vrot.slane %v2374, 5
        %v2377 = vsel %vm1118, %v2372, %v2376
        %v2379 = vshrl.u32 %v2302, 16
        %v2381 = vrot.slane %v2379, 4
        %v2382 = vshll.u32 %v2302, 16
        %v2384 = vrot.slane %v2382, 5
        %v2385 = vor.u32 %v2381, %v2384
        %v2386 = vrot.slane %v2385, 4
        %v2388 = vshll.u32 %v2303, 16
        %v2390 = vrot.slane %v2388, 5
        %v2391 = vsel %vm1118, %v2386, %v2390
        %v2393 = vshrl.u32 %v2304, 16
        %v2395 = vrot.slane %v2393, 4
        %v2396 = vshll.u32 %v2304, 16
        %v2398 = vrot.slane %v2396, 5
        %v2399 = vor.u32 %v2395, %v2398
        %v2400 = vrot.slane %v2399, 4
        %v2402 = vshll.u32 %v2305, 16
        %v2404 = vrot.slane %v2402, 5
        %v2405 = vsel %vm1118, %v2400, %v2404
        %v2407 = vshrl.u32 %v2306, 16
        %v2409 = vrot.slane %v2407, 4
        %v2410 = vshll.u32 %v2306, 16
        %v2412 = vrot.slane %v2410, 5
        %v2413 = vor.u32 %v2409, %v2412
        %v2414 = vrot.slane %v2413, 4
        %v2416 = vshll.u32 %v2307, 16
        %v2418 = vrot.slane %v2416, 5
        %v2419 = vsel %vm1118, %v2414, %v2418
        %s2420 = scalar_lea.vmem %s4, 112
        %v2421 = vld [vmem:[%s2420] sm:$0xf]
        %v2422 = vld [vmem:[%s2420 + $0x4] sm:$0xf]
        %v2423 = vld [vmem:[%s2420 + $0x8] sm:$0xf]
        %v2424 = vld [vmem:[%s2420 + $0xc] sm:$0xf]
        %v2425 = vunpack.c.l.b16 %v2321
        %v2426 = vunpack.c.l.b16 %v2335
        %v2427 = vunpack.c.l.b16 %v2349
        %v2428 = vunpack.c.l.b16 %v2363
        %v2429 = vunpack.c.l.b16 %v2377
        %v2430 = vunpack.c.l.b16 %v2391
        %v2431 = vunpack.c.l.b16 %v2405
        %v2432 = vunpack.c.l.b16 %v2419
        %v2433 = vpack.c.b16 %v2426, %v2425
        %v2434 = vpack.c.b16 %v2428, %v2427
        %v2435 = vpack.c.b16 %v2430, %v2429
        %v2436 = vpack.c.b16 %v2432, %v2431
        %v2441 = vunpack.c.l.b16 %v2421
        %v2442 = vunpack.c.l.b16 %v2422
        %v2443 = vunpack.c.l.b16 %v2423
        %v2444 = vunpack.c.l.b16 %v2424
        %v2445 = vpack.c.b16 %v2442, %v2441
        %v2446 = vpack.c.b16 %v2444, %v2443
        %v2450 = vsel %vm787, %v2433, 0
        %v2453 = vsel %vm787, %v2434, 0
        %v2456 = vsel %vm787, %v2435, 0
        %v2459 = vsel %vm787, %v2436, 0
        %2461 = vmatprep.subr.bf16.mxu0 0
        %2462 = vmatpush1.bf16.msra.mxu0 0
        %2463 = vmatprep.subr.bf16.mxu0 0
        %2464 = vmatpush1.bf16.msra.mxu0 0
        %2465 = vmatprep.subr.bf16.mxu0 0
        %2466 = vmatpush1.bf16.msra.mxu0 0
        %2467 = vmatprep.subr.bf16.mxu0 0
        %2468 = vmatpush1.bf16.msra.mxu0 0
        %2469 = vmatprep.subr.bf16.mxu0 0
        %2470 = vmatpush1.bf16.msra.mxu0 0
        %2471 = vmatprep.subr.bf16.mxu0 0
        %2472 = vmatpush1.bf16.msra.mxu0 0
        %2473 = vmatprep.subr.bf16.mxu0 0
        %2474 = vmatpush1.bf16.msra.mxu0 %v2446
        %2475 = vmatprep.subr.bf16.mxu0 0
        %2476 = vmatpush1.bf16.msra.mxu0 %v2445
        %2477 = vmatprep.subr.bf16.mxu0 0
        %2478 = vmatpush2.bf16.msra.mxu0 0
        %2479 = vmatprep.subr.bf16.mxu0 0
        %2480 = vmatpush2.bf16.msra.mxu0 0
        %2481 = vmatprep.subr.bf16.mxu0 0
        %2482 = vmatpush2.bf16.msra.mxu0 0
        %2483 = vmatprep.subr.bf16.mxu0 0
        %2484 = vmatpush2.bf16.msra.mxu0 0
        %2485 = vmatprep.subr.bf16.mxu0 0
        %2486 = vmatpush2.bf16.msra.mxu0 0
        %2487 = vmatprep.subr.bf16.mxu0 0
        %2488 = vmatpush2.bf16.msra.mxu0 0
        %2489 = vmatprep.subr.bf16.mxu0 0
        %2490 = vmatpush2.bf16.msra.mxu0 0
        %2491 = vmatprep.subr.bf16.mxu0 0
        %2492 = vmatpush2.bf16.msra.mxu0 0
        %2493 = vmatprep.mubr.bf16.mxu0 0
        %2494 = vmatmul.mubr.bf16.gmra.mxu0 %v2450
        %v2495 = vpop.f32.mrf.mxu0
        %v2496 = vadd.f32 0.0, %v2495
        %v2497 = vpop.f32.mrf.mxu0
        %v2498 = vpop.f32.mrf.mxu0
        %v2499 = vadd.f32 0.0, %v2498
        %v2500 = vpop.f32.mrf.mxu0
        %2501 = vmatprep.mubr.bf16.mxu0 0
        %2502 = vmatmul.mubr.bf16.gmra.mxu0 %v2453
        %v2503 = vpop.f32.mrf.mxu0
        %v2504 = vadd.f32 0.0, %v2503
        %v2505 = vpop.f32.mrf.mxu0
        %v2506 = vpop.f32.mrf.mxu0
        %v2507 = vadd.f32 0.0, %v2506
        %v2508 = vpop.f32.mrf.mxu0
        %2509 = vmatprep.mubr.bf16.mxu0 0
        %2510 = vmatmul.mubr.bf16.gmra.mxu0 %v2456
        %v2511 = vpop.f32.mrf.mxu0
        %v2512 = vadd.f32 0.0, %v2511
        %v2513 = vpop.f32.mrf.mxu0
        %v2514 = vpop.f32.mrf.mxu0
        %v2515 = vadd.f32 0.0, %v2514
        %v2516 = vpop.f32.mrf.mxu0
        %2517 = vmatprep.mubr.bf16.mxu0 0
        %2518 = vmatmul.mubr.bf16.gmra.mxu0 %v2459
        %v2519 = vpop.f32.mrf.mxu0
        %v2520 = vadd.f32 0.0, %v2519
        %v2521 = vpop.f32.mrf.mxu0
        %v2522 = vpop.f32.mrf.mxu0
        %v2523 = vadd.f32 0.0, %v2522
        %v2524 = vpop.f32.mrf.mxu0
        %2525 = vdwg.mxu0
        %v2526 = vadd.f32 %v2284, %v2496
        %v2527 = vadd.f32 %v2285, %v2499
        %v2528 = vadd.f32 %v2286, %v2504
        %v2529 = vadd.f32 %v2287, %v2507
        %v2530 = vadd.f32 %v2288, %v2512
        %v2531 = vadd.f32 %v2289, %v2515
        %v2532 = vadd.f32 %v2290, %v2520
        %v2533 = vadd.f32 %v2291, %v2523
        %v2534 = vld [vmem:[%s2161] sm:$0xe]
        %v2535 = vld [vmem:[%s2161 + $0x8] sm:$0xe]
        %v2536 = vld [vmem:[%s2161 + $0x10] sm:$0xe]
        %v2537 = vld [vmem:[%s2161 + $0x18] sm:$0xe]
        %v2538 = vld [vmem:[%s2161 + $0x20] sm:$0xe]
        %v2539 = vld [vmem:[%s2161 + $0x28] sm:$0xe]
        %v2540 = vld [vmem:[%s2161 + $0x30] sm:$0xe]
        %v2541 = vld [vmem:[%s2161 + $0x38] sm:$0xe]
        %v2558 = vrot.slane %v2534, 5
        %v2559 = vrot.slane %v2558, 4
        %v2560 = vrot.slane %v2293, 5
        %v2561 = vsel %vm1472, %v2559, %v2560
        %v2562 = vrot.slane %v2535, 5
        %v2563 = vrot.slane %v2562, 4
        %v2564 = vrot.slane %v2295, 5
        %v2565 = vsel %vm1472, %v2563, %v2564
        %v2566 = vrot.slane %v2536, 5
        %v2567 = vrot.slane %v2566, 4
        %v2568 = vrot.slane %v2297, 5
        %v2569 = vsel %vm1472, %v2567, %v2568
        %v2570 = vrot.slane %v2537, 5
        %v2571 = vrot.slane %v2570, 4
        %v2572 = vrot.slane %v2299, 5
        %v2573 = vsel %vm1472, %v2571, %v2572
        %v2574 = vrot.slane %v2538, 5
        %v2575 = vrot.slane %v2574, 4
        %v2576 = vrot.slane %v2301, 5
        %v2577 = vsel %vm1472, %v2575, %v2576
        %v2578 = vrot.slane %v2539, 5
        %v2579 = vrot.slane %v2578, 4
        %v2580 = vrot.slane %v2303, 5
        %v2581 = vsel %vm1472, %v2579, %v2580
        %v2582 = vrot.slane %v2540, 5
        %v2583 = vrot.slane %v2582, 4
        %v2584 = vrot.slane %v2305, 5
        %v2585 = vsel %vm1472, %v2583, %v2584
        %v2586 = vrot.slane %v2541, 5
        %v2587 = vrot.slane %v2586, 4
        %v2588 = vrot.slane %v2307, 5
        %v2589 = vsel %vm1472, %v2587, %v2588
        %s2590 = scalar_lea.vmem %s4, 128
        %v2591 = vld [vmem:[%s2590] sm:$0xf]
        %v2592 = vld [vmem:[%s2590 + $0x4] sm:$0xf]
        %v2593 = vld [vmem:[%s2590 + $0x8] sm:$0xf]
        %v2594 = vld [vmem:[%s2590 + $0xc] sm:$0xf]
        %v2595 = vunpack.c.l.b16 %v2561
        %v2596 = vunpack.c.l.b16 %v2565
        %v2597 = vunpack.c.l.b16 %v2569
        %v2598 = vunpack.c.l.b16 %v2573
        %v2599 = vunpack.c.l.b16 %v2577
        %v2600 = vunpack.c.l.b16 %v2581
        %v2601 = vunpack.c.l.b16 %v2585
        %v2602 = vunpack.c.l.b16 %v2589
        %v2603 = vpack.c.b16 %v2596, %v2595
        %v2604 = vpack.c.b16 %v2598, %v2597
        %v2605 = vpack.c.b16 %v2600, %v2599
        %v2606 = vpack.c.b16 %v2602, %v2601
        %v2611 = vunpack.c.l.b16 %v2591
        %v2612 = vunpack.c.l.b16 %v2592
        %v2613 = vunpack.c.l.b16 %v2593
        %v2614 = vunpack.c.l.b16 %v2594
        %v2615 = vpack.c.b16 %v2612, %v2611
        %v2616 = vpack.c.b16 %v2614, %v2613
        %v2620 = vsel %vm787, %v2603, 0
        %v2623 = vsel %vm787, %v2604, 0
        %v2626 = vsel %vm787, %v2605, 0
        %v2629 = vsel %vm787, %v2606, 0
        %2631 = vmatprep.subr.bf16.mxu0 0
        %2632 = vmatpush1.bf16.msra.mxu0 0
        %2633 = vmatprep.subr.bf16.mxu0 0
        %2634 = vmatpush1.bf16.msra.mxu0 0
        %2635 = vmatprep.subr.bf16.mxu0 0
        %2636 = vmatpush1.bf16.msra.mxu0 0
        %2637 = vmatprep.subr.bf16.mxu0 0
        %2638 = vmatpush1.bf16.msra.mxu0 0
        %2639 = vmatprep.subr.bf16.mxu0 0
        %2640 = vmatpush1.bf16.msra.mxu0 0
        %2641 = vmatprep.subr.bf16.mxu0 0
        %2642 = vmatpush1.bf16.msra.mxu0 0
        %2643 = vmatprep.subr.bf16.mxu0 0
        %2644 = vmatpush1.bf16.msra.mxu0 %v2616
        %2645 = vmatprep.subr.bf16.mxu0 0
        %2646 = vmatpush1.bf16.msra.mxu0 %v2615
        %2647 = vmatprep.subr.bf16.mxu0 0
        %2648 = vmatpush2.bf16.msra.mxu0 0
        %2649 = vmatprep.subr.bf16.mxu0 0
        %2650 = vmatpush2.bf16.msra.mxu0 0
        %2651 = vmatprep.subr.bf16.mxu0 0
        %2652 = vmatpush2.bf16.msra.mxu0 0
        %2653 = vmatprep.subr.bf16.mxu0 0
        %2654 = vmatpush2.bf16.msra.mxu0 0
        %2655 = vmatprep.subr.bf16.mxu0 0
        %2656 = vmatpush2.bf16.msra.mxu0 0
        %2657 = vmatprep.subr.bf16.mxu0 0
        %2658 = vmatpush2.bf16.msra.mxu0 0
        %2659 = vmatprep.subr.bf16.mxu0 0
        %2660 = vmatpush2.bf16.msra.mxu0 0
        %2661 = vmatprep.subr.bf16.mxu0 0
        %2662 = vmatpush2.bf16.msra.mxu0 0
        %2663 = vmatprep.mubr.bf16.mxu0 0
        %2664 = vmatmul.mubr.bf16.gmra.mxu0 %v2620
        %v2665 = vpop.f32.mrf.mxu0
        %v2666 = vadd.f32 0.0, %v2665
        %v2667 = vpop.f32.mrf.mxu0
        %v2668 = vpop.f32.mrf.mxu0
        %v2669 = vadd.f32 0.0, %v2668
        %v2670 = vpop.f32.mrf.mxu0
        %2671 = vmatprep.mubr.bf16.mxu0 0
        %2672 = vmatmul.mubr.bf16.gmra.mxu0 %v2623
        %v2673 = vpop.f32.mrf.mxu0
        %v2674 = vadd.f32 0.0, %v2673
        %v2675 = vpop.f32.mrf.mxu0
        %v2676 = vpop.f32.mrf.mxu0
        %v2677 = vadd.f32 0.0, %v2676
        %v2678 = vpop.f32.mrf.mxu0
        %2679 = vmatprep.mubr.bf16.mxu0 0
        %2680 = vmatmul.mubr.bf16.gmra.mxu0 %v2626
        %v2681 = vpop.f32.mrf.mxu0
        %v2682 = vadd.f32 0.0, %v2681
        %v2683 = vpop.f32.mrf.mxu0
        %v2684 = vpop.f32.mrf.mxu0
        %v2685 = vadd.f32 0.0, %v2684
        %v2686 = vpop.f32.mrf.mxu0
        %2687 = vmatprep.mubr.bf16.mxu0 0
        %2688 = vmatmul.mubr.bf16.gmra.mxu0 %v2629
        %v2689 = vpop.f32.mrf.mxu0
        %v2690 = vadd.f32 0.0, %v2689
        %v2691 = vpop.f32.mrf.mxu0
        %v2692 = vpop.f32.mrf.mxu0
        %v2693 = vadd.f32 0.0, %v2692
        %v2694 = vpop.f32.mrf.mxu0
        %2695 = vdwg.mxu0
        %v2696 = vadd.f32 %v2526, %v2666
        %v2697 = vadd.f32 %v2527, %v2669
        %v2698 = vadd.f32 %v2528, %v2674
        %v2699 = vadd.f32 %v2529, %v2677
        %v2700 = vadd.f32 %v2530, %v2682
        %v2701 = vadd.f32 %v2531, %v2685
        %v2702 = vadd.f32 %v2532, %v2690
        %v2703 = vadd.f32 %v2533, %v2693
        %v2704 = vld [vmem:[%s5] sm:$0x1]
        %v2706 = vlaneseq
        %v2707 = vshrl.u32 %v2706, 7
        %v2708 = vsub.s32 0, %v2707
        %v2709 = vrot.slane %v2704, %v2708
        %v2711 = vmul.f32 %v2696, %v2709
        %v2712 = vmul.f32 %v2697, %v2709
        %v2713 = vmul.f32 %v2698, %v2709
        %v2714 = vmul.f32 %v2699, %v2709
        %v2715 = vmul.f32 %v2700, %v2709
        %v2716 = vmul.f32 %v2701, %v2709
        %v2717 = vmul.f32 %v2702, %v2709
        %v2718 = vmul.f32 %v2703, %v2709
        %v2719 = vld [vmem:[%s6] sm:$0x1]
        %v2721 = vlaneseq
        %v2722 = vshrl.u32 %v2721, 7
        %v2723 = vsub.s32 0, %v2722
        %v2724 = vrot.slane %v2719, %v2723
        %v2726 = vadd.f32 %v2711, %v2724
        %v2727 = vadd.f32 %v2712, %v2724
        %v2728 = vadd.f32 %v2713, %v2724
        %v2729 = vadd.f32 %v2714, %v2724
        %v2730 = vadd.f32 %v2715, %v2724
        %v2731 = vadd.f32 %v2716, %v2724
        %v2732 = vadd.f32 %v2717, %v2724
        %v2733 = vadd.f32 %v2718, %v2724
        %v2734 = vmax.f32 %v2726, 0.0
        %v2735 = vmax.f32 %v2727, 0.0
        %v2736 = vmax.f32 %v2728, 0.0
        %v2737 = vmax.f32 %v2729, 0.0
        %v2738 = vmax.f32 %v2730, 0.0
        %v2739 = vmax.f32 %v2731, 0.0
        %v2740 = vmax.f32 %v2732, 0.0
        %v2741 = vmax.f32 %v2733, 0.0
        %2742 = vst.msk [vmem:[#allocation4] sm:$0xff] %vm787, %v2734
        %2743 = vst.msk [vmem:[#allocation4 + $0x8] sm:$0xff] %vm787, %v2735
        %2744 = vst.msk [vmem:[#allocation4 + $0x10] sm:$0xff] %vm787, %v2736
        %2745 = vst.msk [vmem:[#allocation4 + $0x18] sm:$0xff] %vm787, %v2737
        %2746 = vst.msk [vmem:[#allocation4 + $0x20] sm:$0xff] %vm787, %v2738
        %2747 = vst.msk [vmem:[#allocation4 + $0x28] sm:$0xff] %vm787, %v2739
        %2748 = vst.msk [vmem:[#allocation4 + $0x30] sm:$0xff] %vm787, %v2740
        %2749 = vst.msk [vmem:[#allocation4 + $0x38] sm:$0xff] %vm787, %v2741
        %v2750 = vld [vmem:[#allocation4] ss:$2 sm:$0xf]
        %s2751 = scalar_lea.vmem [#allocation4], 8
        %v2752 = vld [vmem:[%s2751] ss:$2 sm:$0xf]
        %s2753 = scalar_lea.vmem [#allocation4], 16
        %v2754 = vld [vmem:[%s2753] ss:$2 sm:$0xf]
        %s2755 = scalar_lea.vmem [#allocation4], 24
        %v2756 = vld [vmem:[%s2755] ss:$2 sm:$0xf]
        %s2757 = scalar_lea.vmem [#allocation4], 32
        %v2758 = vld [vmem:[%s2757] ss:$2 sm:$0xf]
        %s2759 = scalar_lea.vmem [#allocation4], 40
        %v2760 = vld [vmem:[%s2759] ss:$2 sm:$0xf]
        %s2761 = scalar_lea.vmem [#allocation4], 48
        %v2762 = vld [vmem:[%s2761] ss:$2 sm:$0xf]
        %s2763 = scalar_lea.vmem [#allocation4], 56
        %v2764 = vld [vmem:[%s2763] ss:$2 sm:$0xf]
        %s2765 = scalar_lea.vmem [#allocation4], 1
        %v2766 = vld [vmem:[%s2765] ss:$2 sm:$0xf]
        %s2767 = scalar_lea.vmem [#allocation4], 9
        %v2768 = vld [vmem:[%s2767] ss:$2 sm:$0xf]
        %s2769 = scalar_lea.vmem [#allocation4], 17
        %v2770 = vld [vmem:[%s2769] ss:$2 sm:$0xf]
        %s2771 = scalar_lea.vmem [#allocation4], 25
        %v2772 = vld [vmem:[%s2771] ss:$2 sm:$0xf]
        %s2773 = scalar_lea.vmem [#allocation4], 33
        %v2774 = vld [vmem:[%s2773] ss:$2 sm:$0xf]
        %s2775 = scalar_lea.vmem [#allocation4], 41
        %v2776 = vld [vmem:[%s2775] ss:$2 sm:$0xf]
        %s2777 = scalar_lea.vmem [#allocation4], 49
        %v2778 = vld [vmem:[%s2777] ss:$2 sm:$0xf]
        %s2779 = scalar_lea.vmem [#allocation4], 57
        %v2780 = vld [vmem:[%s2779] ss:$2 sm:$0xf]
        %v2781 = vmax.f32 %v2750, %v2766
        %v2782 = vmax.f32 %v2752, %v2768
        %v2783 = vmax.f32 %v2754, %v2770
        %v2784 = vmax.f32 %v2756, %v2772
        %v2785 = vmax.f32 %v2758, %v2774
        %v2786 = vmax.f32 %v2760, %v2776
        %v2787 = vmax.f32 %v2762, %v2778
        %v2788 = vmax.f32 %v2764, %v2780
        %v2789 = vmax.f32 %v2781, %v2782
        %v2790 = vmax.f32 %v2783, %v2784
        %v2791 = vmax.f32 %v2785, %v2786
        %v2792 = vmax.f32 %v2787, %v2788
        %v2793 = vsel %vm907, %v2789, 0.0
        %v2794 = vsel %vm907, %v2790, 0.0
        %v2795 = vadd.f32 %v2793, %v2794
        %v2796 = vsel %vm907, %v2791, 0.0
        %v2797 = vadd.f32 %v2795, %v2796
        %v2798 = vsel %vm907, %v2792, 0.0
        %v2799 = vadd.f32 %v2797, %v2798
        %v2800 = vsel %vm907, %v2799, 0.0
        %v2801 = vrot.slane %v2800, 4
        %v2802 = vadd.f32 %v2800, %v2801
        %v2803 = vrot.slane %v2802, 2
        %v2804 = vadd.f32 %v2802, %v2803
        %v2805 = vrot.slane %v2804, 1
        %v2806 = vadd.f32 %v2804, %v2805
        %v2807 = vmul.f32 %v2806, 0.0625
        %v2808 = vld [vmem:[%s7] sm:$0xff]
        %v2809 = vld [vmem:[%s7 + $0x8] sm:$0xff]
        %v2810 = vld [vmem:[%s7 + $0x10] sm:$0xff]
        %v2811 = vld [vmem:[%s7 + $0x18] sm:$0xff]
        %v2812 = vld [vmem:[%s8] sm:$0x1]
        %v2814 = vsel %vm787, %v2807, 0
        %2816 = vmatprep.subr.mxu0 0.0
        %2817 = vmatpush1.msra.mxu0 0.0
        %2818 = vmatprep.subr.mxu0 0.0
        %2819 = vmatpush1.msra.mxu0 0.0
        %2820 = vmatprep.subr.mxu0 0.0
        %2821 = vmatpush1.msra.mxu0 0.0
        %2822 = vmatprep.subr.mxu0 0.0
        %2823 = vmatpush1.msra.mxu0 0.0
        %2824 = vmatprep.subr.mxu0 0.0
        %2825 = vmatpush1.msra.mxu0 0.0
        %2826 = vmatprep.subr.mxu0 0.0
        %2827 = vmatpush1.msra.mxu0 0.0
        %2828 = vmatprep.subr.mxu0 0.0
        %2829 = vmatpush1.msra.mxu0 0.0
        %2830 = vmatprep.subr.mxu0 0.0
        %2831 = vmatpush1.msra.mxu0 0.0
        %2832 = vmatprep.subr.mxu0 0.0
        %2833 = vmatpush1.msra.mxu0 0.0
        %2834 = vmatprep.subr.mxu0 0.0
        %2835 = vmatpush1.msra.mxu0 0.0
        %2836 = vmatprep.subr.mxu0 0.0
        %2837 = vmatpush1.msra.mxu0 0.0
        %2838 = vmatprep.subr.mxu0 0.0
        %2839 = vmatpush1.msra.mxu0 0.0
        %2840 = vmatprep.subr.mxu0 0.0
        %2841 = vmatpush1.msra.mxu0 %v2811
        %2842 = vmatprep.subr.mxu0 0.0
        %2843 = vmatpush1.msra.mxu0 %v2810
        %2844 = vmatprep.subr.mxu0 0.0
        %2845 = vmatpush1.msra.mxu0 %v2809
        %2846 = vmatprep.subr.mxu0 0.0
        %2847 = vmatpush1.msra.mxu0 %v2808
        %2848 = vmatprep.subr.mxu0 0.0
        %2849 = vmatpush2.msra.mxu0 0.0
        %2850 = vmatprep.subr.mxu0 0.0
        %2851 = vmatpush2.msra.mxu0 0.0
        %2852 = vmatprep.subr.mxu0 0.0
        %2853 = vmatpush2.msra.mxu0 0.0
        %2854 = vmatprep.subr.mxu0 0.0
        %2855 = vmatpush2.msra.mxu0 0.0
        %2856 = vmatprep.subr.mxu0 0.0
        %2857 = vmatpush2.msra.mxu0 0.0
        %2858 = vmatprep.subr.mxu0 0.0
        %2859 = vmatpush2.msra.mxu0 0.0
        %2860 = vmatprep.subr.mxu0 0.0
        %2861 = vmatpush2.msra.mxu0 0.0
        %2862 = vmatprep.subr.mxu0 0.0
        %2863 = vmatpush2.msra.mxu0 0.0
        %2864 = vmatprep.subr.mxu0 0.0
        %2865 = vmatpush2.msra.mxu0 0.0
        %2866 = vmatprep.subr.mxu0 0.0
        %2867 = vmatpush2.msra.mxu0 0.0
        %2868 = vmatprep.subr.mxu0 0.0
        %2869 = vmatpush2.msra.mxu0 0.0
        %2870 = vmatprep.subr.mxu0 0.0
        %2871 = vmatpush2.msra.mxu0 0.0
        %2872 = vmatprep.subr.mxu0 0.0
        %2873 = vmatpush2.msra.mxu0 0.0
        %2874 = vmatprep.subr.mxu0 0.0
        %2875 = vmatpush2.msra.mxu0 0.0
        %2876 = vmatprep.subr.mxu0 0.0
        %2877 = vmatpush2.msra.mxu0 0.0
        %2878 = vmatprep.subr.mxu0 0.0
        %2879 = vmatpush2.msra.mxu0 0.0
        %2880 = vmatprep.mubr.f32.mxu0 0.0
        %2881 = vmatmul.mubr.f32.gmra.mxu0 %v2814
        %v2882 = vpop.f32.mrf.mxu0
        %v2883 = vadd.f32 %v2812, %v2882
        %v2884 = vpop.f32.mrf.mxu0
        %2885 = vdwg.mxu0
        %2886 = vst [vmem:[%s324] sm:$0x1] %v2883
        %s2887 = sand.u32 %s225, 1
        %s2888 = scalar_lea.sflag [#allocation6], %s2887
        %s2889 = sand.u32 %s225, 1
        %s2890 = scalar_lea.vmem [#allocation5], %s2889
        // Predicated region
        $region57: #{cnn2_forward.1} parent=55 // pred_check
          %p2891 = pneg %p235
        $region58: #{cnn2_forward.1} parent=55 // pred_check_branch
          %2893 = sbr.rel (%p2891) target = $region60
        $region59: #{cnn2_forward.1} parent=55 // pred_region
          %s2895 = ssub.s32 16, 16
          %2896 = vsyncadd %s2888, %s2895
          %s2897 = smul.addr %s23, 16
          %s2898 = scalar_lea.hbm %s9, %s2897
          %s2900 = sshll.u32 %s2890, 4
          %s2901 = int_to_ptr.vmem [resolvable:$true] %s2900
          %2903 = dma.vmem_to_hbm [thread:$0]  %s2901, 16, %s2898, %s2888
        $region60: #{cnn2_forward.1} parent=55 // pred_fallthru
          _
      $region56: #{cnn2_forward.1} parent=5 // pred_fallthru
        _
      %p2904 = scmp.le.s32.totalorder 2, %s18
      // Predicated region
      $region61: #{cnn2_forward.1} parent=5 // pred_check
        %p2905 = pneg %p2904
      $region62: #{cnn2_forward.1} parent=5 // pred_check_branch
        %2907 = sbr.rel (%p2905) target = $region64
      $region63: #{cnn2_forward.1} parent=5 // pred_region
        %s2908 = ssub.s32 %s18, 2
        // Predicated region
        $region65: #{cnn2_forward.1} parent=63 // pred_check
          %p2909 = pneg %p241
        $region66: #{cnn2_forward.1} parent=63 // pred_check_branch
          %2911 = sbr.rel (%p2909) target = $region68
        $region67: #{cnn2_forward.1} parent=63 // pred_region
          %s2912 = sand.u32 %s226, 1
          %s2913 = scalar_lea.sflag [#allocation6], %s2912
          %s2914 = sand.u32 %s226, 1
          %s2915 = scalar_lea.vmem [#allocation5], %s2914
          %2916 = dma.done %s2913, 16
        $region68: #{cnn2_forward.1} parent=63 // pred_fallthru
          _
      $region64: #{cnn2_forward.1} parent=5 // pred_fallthru
        _
    $region6: #{cnn2_forward.1} parent=1 // loop_footer
      %s22 = sadd.s32 1, %s18
    $region7: #{cnn2_forward.1} parent=1 // loop_footer_branch
      %17 = sbr.rel target = $region3
    $region8: #{cnn2_forward.1} parent=1 // loop_exit
      _
    %2917 = vsyncpa [#allocation6], 1
    %s2918 = scalar_lea.sflag [#allocation6], 1
    %2919 = vsyncpa %s2918, 1

</llo_original>
